<compile_context>
chip_gen: v7x
topology: tpu7x:2x2x1
jax: 0.10.0
libtpu: 0.0.40
codegen_flags: <defaults>
</compile_context>

<pallas_src>
import functools

import jax
import jax.numpy as jnp
from jax import lax
from jax.experimental import pallas as pl
from jax.experimental.pallas import tpu as pltpu


# ------------------------------ helpers ------------------------------------

def _round_up(x, m):
    return ((x + m - 1) // m) * m


def _pick_tile(dim, target, align):
    """Largest tile <= target that divides `dim` and is a multiple of `align`.
    Falls back to the full dim (always a legal Mosaic block)."""
    if dim <= target:
        return dim
    t = (target // align) * align
    while t >= align:
        if dim % t == 0:
            return t
        t -= align
    return dim


def _vmem_limit(tile_bytes):
    # Conservative cap: fits v7x's 64 MiB physical VMEM with headroom for
    # Mosaic internal scratch; v5e/v6e (128 MiB) could raise this further.
    return int(min(56 * 1024 * 1024, max(32 * 1024 * 1024, 2 * tile_bytes)))


# ----------------------------- Pallas kernels -------------------------------

def _block_kernel(xf_ref, ln1w_ref, ln1b_ref, wq_ref, wk_ref, wv_ref,
                  ln2w_ref, ln2b_ref, wff_ref, bff_ref, o_ref,
                  hf_sc, k_sc, v_sc):
    """One transformer Block (one channel chunk, one query-row tile).

    xf_ref          : (B, T, cc) f32  full sequence of this chunk (resident
                                      across all query tiles of the chunk)
    o_ref           : (B, tq, cc) f32 current query-row tile of the output
    hf_sc/k_sc/v_sc : (B, T, cc) bf16 scratch, filled once per chunk
    """
    eps = 1e-5
    B, T, cc = xf_ref.shape
    tq = o_ref.shape[1]
    scale = 1.0 / float(cc) ** 0.5

    def layernorm(z, w, b):
        mu = jnp.mean(z, axis=-1, keepdims=True)
        var = jnp.mean((z - mu) * (z - mu), axis=-1, keepdims=True)
        return (z - mu) * lax.rsqrt(var + eps) * w + b

    # --- once per channel chunk: full-sequence LN1 + K/V projections --------
    @pl.when(pl.program_id(1) == 0)
    def _():
        hf = layernorm(xf_ref[...], ln1w_ref[...], ln1b_ref[...])
        hf = hf.astype(jnp.bfloat16)
        hf_sc[...] = hf
        hf2d = hf.reshape(B * T, cc)          # one large MXU op, not B small ones
        k_sc[...] = jnp.dot(hf2d, wk_ref[...],
                            preferred_element_type=jnp.float32
                            ).astype(jnp.bfloat16).reshape(B, T, cc)
        v_sc[...] = jnp.dot(hf2d, wv_ref[...],
                            preferred_element_type=jnp.float32
                            ).astype(jnp.bfloat16).reshape(B, T, cc)

    # --- per query-row tile --------------------------------------------------
    row0 = pl.multiple_of(pl.program_id(1) * tq, tq)
    xq = xf_ref[:, pl.ds(row0, tq), :]        # (B, tq, cc) f32 residual path
    hq = hf_sc[:, pl.ds(row0, tq), :]         # (B, tq, cc) bf16, already LN'd

    q = jnp.dot(hq.reshape(B * tq, cc), wq_ref[...],
                preferred_element_type=jnp.float32)
    q = (q * scale).astype(jnp.bfloat16).reshape(B, tq, cc)

    scores = jnp.einsum('btd,bsd->bts', q, k_sc[...],
                        preferred_element_type=jnp.float32)    # (B, tq, T)

    # causal mask: global query row = row0 + local row
    rows = row0 + lax.broadcasted_iota(jnp.int32, (tq, T), 0)
    cols = lax.broadcasted_iota(jnp.int32, (tq, T), 1)
    scores = jnp.where((cols <= rows)[None, :, :], scores, -1e30)

    # softmax over keys (f32 exp; EUP approx reciprocal for the denominator)
    scores = scores - jnp.max(scores, axis=-1, keepdims=True)
    p = jnp.exp(scores)
    probs = (p * pl.reciprocal(jnp.sum(p, axis=-1, keepdims=True), approx=True)
             ).astype(jnp.bfloat16)
    # TODO(synk): flash-style key tiling (online softmax + causal tile skip)
    # for very long T, to bound the (B, tq, T) score temporary on v7x.

    attn = jnp.einsum('bts,bsd->btd', probs, v_sc[...],
                      preferred_element_type=jnp.float32)

    x1 = xq + attn                                             # residual 1

    h2 = layernorm(x1, ln2w_ref[...], ln2b_ref[...]).astype(jnp.bfloat16)
    ff = jnp.dot(h2.reshape(B * tq, cc), wff_ref[...],
                 preferred_element_type=jnp.float32).reshape(B, tq, cc)
    o_ref[...] = x1 + ff + bff_ref[...]                        # residual 2


def _lm_head_kernel(x_ref, w_ref, b_ref, o_ref):
    """(tm, C) bf16 @ (C, tn) bf16 + (1, tn) f32 -> (tm, tn) f32 tile."""
    o_ref[...] = jnp.dot(x_ref[...], w_ref[...],
                         preferred_element_type=jnp.float32) + b_ref[...]


# ---------------------------- kernel wrappers -------------------------------

def _run_blocks(x, bp, n, *, tq_target=128):
    """x: (B, T, C) f32; bp: per-block params stacked on axis 0 (length n)."""
    B, T, C = x.shape
    cc = C // n
    tq = _pick_tile(T, tq_target, 16)     # 16-aligned -> clean bf16 sublane tiles
    grid = (n, T // tq)

    w_spec = pl.BlockSpec((None, cc, cc), lambda nn, i: (nn, 0, 0))
    vec_spec = pl.BlockSpec((None, 1, cc), lambda nn, i: (nn, 0, 0))

    if cc % 128 == 0:
        # Lane-dense chunks: block the (B, T, C) activation directly -> no
        # HBM reshape/transpose round-trips before / after the call.
        x_in = x
        xf_spec = pl.BlockSpec((B, T, cc), lambda nn, i: (0, 0, nn))
        out_spec = pl.BlockSpec((B, tq, cc), lambda nn, i: (0, i, nn))
        out_shape = jax.ShapeDtypeStruct((B, T, C), jnp.float32)
        unstack = lambda y: y
    else:
        # Small cc (e.g. tiny test shapes): stacked (n, B, T, cc) layout so the
        # last block dim equals the full array dim (Mosaic layout rule).
        x_in = x.reshape(B, T, n, cc).transpose(2, 0, 1, 3)
        xf_spec = pl.BlockSpec((None, B, T, cc), lambda nn, i: (nn, 0, 0, 0))
        out_spec = pl.BlockSpec((None, B, tq, cc), lambda nn, i: (nn, 0, i, 0))
        out_shape = jax.ShapeDtypeStruct((n, B, T, cc), jnp.float32)
        unstack = lambda y: y.transpose(1, 2, 0, 3).reshape(B, T, C)

    tile_bytes = (2 * B * T * cc * 4                  # xf block (double-buffered)
                  + 2 * B * tq * cc * 4               # output block
                  + 2 * (4 * cc * cc * 2 + 5 * cc * 4)  # weights + LN/bias
                  + 3 * B * T * cc * 2                # hf / k / v scratch
                  + 2 * B * tq * T * 4                # score tensor + exp temp
                  + 8 * B * tq * cc * 4)              # q / attn / LN temporaries

    flops = n * (8 * B * T * cc * cc + 4 * B * T * T * cc)
    cost = pl.CostEstimate(
        flops=int(flops),
        transcendentals=int(n * B * T * T),
        bytes_accessed=int(2 * B * T * C * 4
                           + n * (4 * cc * cc * 2 + 5 * cc * 4)))

    out = pl.pallas_call(
        _block_kernel,
        out_shape=out_shape,
        grid=grid,
        in_specs=[xf_spec,
                  vec_spec, vec_spec,                 # ln1 w/b
                  w_spec, w_spec, w_spec,             # wq, wk, wv
                  vec_spec, vec_spec,                 # ln2 w/b
                  w_spec, vec_spec],                  # wff, bff
        out_specs=out_spec,
        scratch_shapes=[pltpu.VMEM((B, T, cc), jnp.bfloat16),   # hf
                        pltpu.VMEM((B, T, cc), jnp.bfloat16),   # k
                        pltpu.VMEM((B, T, cc), jnp.bfloat16)],  # v
        compiler_params=pltpu.CompilerParams(
            dimension_semantics=("parallel", "arbitrary"),
            vmem_limit_bytes=_vmem_limit(tile_bytes)),
        cost_estimate=cost,
    )(x_in, bp['ln1_w'], bp['ln1_b'], bp['wq'], bp['wk'], bp['wv'],
      bp['ln2_w'], bp['ln2_b'], bp['wff'], bp['bff'])
    return unstack(out)


def _run_lm_head(x2d, w, b, *, tm_target=512, tn_target=2048):
    """x2d: (M, C) f32; w: (C, V) bf16; b: (1, V) f32."""
    M, C = x2d.shape
    V = w.shape[1]

    # Pad the vocab to a lane-dense multiple of the tile so no tile ever has to
    # hold the whole (C, V) weight and every store is a full-lane vst.
    tn = min(tn_target, _round_up(V, 128))
    Vp = _round_up(V, tn)
    if Vp != V:
        w = jnp.pad(w, ((0, 0), (0, Vp - V)))
        b = jnp.pad(b, ((0, 0), (0, Vp - V)))
    tm = _pick_tile(M, tm_target, 8)

    # Grid order: vocab tile outer, row tile inner -> the (C, tn) weight block
    # index is constant along the inner axis (weight stays resident in VMEM);
    # only the small bf16 activation tiles stream from HBM.
    grid = (Vp // tn, M // tm)

    tile_bytes = 2 * (tm * C * 2 + C * tn * 2 + tn * 4 + tm * tn * 4)
    cost = pl.CostEstimate(
        flops=int(2 * M * C * Vp), transcendentals=0,
        bytes_accessed=int((Vp // tn) * M * C * 2 + C * Vp * 2 + M * Vp * 4))

    out = pl.pallas_call(
        _lm_head_kernel,
        out_shape=jax.ShapeDtypeStruct((M, Vp), jnp.float32),
        grid=grid,
        in_specs=[pl.BlockSpec((tm, C), lambda j, i: (i, 0)),
                  pl.BlockSpec((C, tn), lambda j, i: (0, j)),
                  pl.BlockSpec((1, tn), lambda j, i: (0, j))],
        out_specs=pl.BlockSpec((tm, tn), lambda j, i: (i, j)),
        compiler_params=pltpu.CompilerParams(
            dimension_semantics=("parallel", "parallel"),
            vmem_limit_bytes=_vmem_limit(tile_bytes)),
        cost_estimate=cost,
    )(x2d.astype(jnp.bfloat16), w, b)     # activation pre-cast to bf16 once
    return out[:, :V] if Vp != V else out


# --------------------------- parameter creation ------------------------------

def init_params(key, vocab_size, context_size, n_embd, n_transformers):
    cc = n_embd // n_transformers
    n = n_transformers
    keys = iter(jax.random.split(key, 16))

    def nrm(shape, dtype=jnp.float32, scale=0.02):
        return (scale * jax.random.normal(next(keys), shape)).astype(dtype)

    return {
        'tok_emb': nrm((vocab_size, n_embd)),
        'pos_emb': nrm((context_size, n_embd)),
        # matmul weights in bf16: bf16 MXU path + halved HBM->VMEM traffic;
        # accumulation stays f32 inside the kernels.
        'lm_w': nrm((n_embd, vocab_size), jnp.bfloat16),
        'lm_b': nrm((1, vocab_size)),
        'blk': {                                    # per-block params, stacked
            'ln1_w': jnp.ones((n, 1, cc), jnp.float32) + nrm((n, 1, cc)),
            'ln1_b': nrm((n, 1, cc)),
            'wq': nrm((n, cc, cc), jnp.bfloat16),
            'wk': nrm((n, cc, cc), jnp.bfloat16),
            'wv': nrm((n, cc, cc), jnp.bfloat16),
            'ln2_w': jnp.ones((n, 1, cc), jnp.float32) + nrm((n, 1, cc)),
            'ln2_b': nrm((n, 1, cc)),
            'wff': nrm((n, cc, cc), jnp.bfloat16),
            'bff': nrm((n, 1, cc)),
        },
    }


# ------------------------------ forward pass --------------------------------

@functools.partial(jax.jit, static_argnames=('n_transformers',))
def nanogpt_forward(tokens, params, n_transformers):
    B, T = tokens.shape
    C = params['tok_emb'].shape[1]

    # token + positional embeddings (gather = glue, plain JAX)
    x = jnp.take(params['tok_emb'], tokens, axis=0)                 # (B, T, C)
    pos = jnp.arange(T, dtype=jnp.int32)
    x = x + jnp.take(params['pos_emb'], pos, axis=0)[None, :, :]

    # one gridded pallas_call over (channel chunk, query-row tile)
    x = _run_blocks(x, params['blk'], n_transformers)

    # dropout(p=0.2) is identity in eval mode.
    # TODO(synk): training-mode dropout (stateful PRNG masking) not implemented.

    logits = _run_lm_head(x.reshape(B * T, C), params['lm_w'], params['lm_b'])
    return logits.reshape(B, T, -1)


# ------------------ pure-JAX reference (silent sanity check) -----------------

def _reference_forward(tokens, params, n_transformers):
    B, T = tokens.shape
    x = params['tok_emb'][tokens] + params['pos_emb'][:T][None]
    C = x.shape[-1]
    cc = C // n_transformers
    bp = params['blk']

    def ln(z, w, b):
        mu = z.mean(-1, keepdims=True)
        var = ((z - mu) ** 2).mean(-1, keepdims=True)
        return (z - mu) / jnp.sqrt(var + 1e-5) * w + b

    outs = []
    for i in range(n_transformers):
        c = x[..., i * cc:(i + 1) * cc]
        h = ln(c, bp['ln1_w'][i], bp['ln1_b'][i])
        q = h @ bp['wq'][i].astype(jnp.float32)
        k = h @ bp['wk'][i].astype(jnp.float32)
        v = h @ bp['wv'][i].astype(jnp.float32)
        d = jnp.einsum('btd,bsd->bts', q, k) / (cc ** 0.5)
        mask = jnp.tril(jnp.ones((T, T), bool))[None]
        d = jnp.where(mask, d, -jnp.inf)
        w = jax.nn.softmax(d, axis=-1)
        c1 = c + jnp.einsum('bts,bsd->btd', w, v)
        h2 = ln(c1, bp['ln2_w'][i], bp['ln2_b'][i])
        outs.append(c1 + h2 @ bp['wff'][i].astype(jnp.float32) + bp['bff'][i])
    x = jnp.concatenate(outs, axis=2)
    return x @ params['lm_w'].astype(jnp.float32) + params['lm_b']


if __name__ == "__main__":
    vocab_size, context_size, n_embd, n_transformers = 64, 8, 32, 2
    B, T = 2, 8

    key = jax.random.PRNGKey(0)
    pkey, tkey = jax.random.split(key)
    params = init_params(pkey, vocab_size, context_size, n_embd, n_transformers)
    tokens = jax.random.randint(tkey, (B, T), 0, vocab_size, dtype=jnp.int32)

    logits = nanogpt_forward(tokens, params, n_transformers=n_transformers)
    logits = jax.block_until_ready(logits)

    ref = _reference_forward(tokens, params, n_transformers)
    assert logits.shape == (B, T, vocab_size)
    # bf16 matmul operands + approx reciprocal -> mixed-precision tolerance.
    max_err = float(jnp.max(jnp.abs(logits - ref)))
    assert jnp.allclose(logits, ref, atol=2e-2, rtol=2e-2), max_err

    print("KERNEL_OK")
</pallas_src>

<mosaic_0001>
module attributes {stable_mosaic.version = 11 : i64} {
  func.func @_block_kernel(%arg0: i32, %arg1: i32, %arg2: memref<1x2x8x16xf32, #tpu.memory_space<vmem>>, %arg3: memref<1x1x16xf32, #tpu.memory_space<vmem>>, %arg4: memref<1x1x16xf32, #tpu.memory_space<vmem>>, %arg5: memref<1x16x16xbf16, #tpu.memory_space<vmem>>, %arg6: memref<1x16x16xbf16, #tpu.memory_space<vmem>>, %arg7: memref<1x16x16xbf16, #tpu.memory_space<vmem>>, %arg8: memref<1x1x16xf32, #tpu.memory_space<vmem>>, %arg9: memref<1x1x16xf32, #tpu.memory_space<vmem>>, %arg10: memref<1x16x16xbf16, #tpu.memory_space<vmem>>, %arg11: memref<1x1x16xf32, #tpu.memory_space<vmem>>, %arg12: memref<1x2x8x16xf32, #tpu.memory_space<vmem>>, %arg13: memref<2x8x16xbf16, #tpu.memory_space<vmem>>, %arg14: memref<2x8x16xbf16, #tpu.memory_space<vmem>>, %arg15: memref<2x8x16xbf16, #tpu.memory_space<vmem>>) attributes {dimension_semantics = [#tpu.dimension_semantics<parallel>, #tpu.dimension_semantics<arbitrary>], iteration_bounds = array<i64: 2, 1>, scalar_prefetch = 0 : i64, scratch_operands = 3 : i64, tpu.core_type = #tpu.core_type<tc>, window_params = [{transform_indices = @transform_0, window_bounds = array<i64: 1, 2, 8, 16>}, {transform_indices = @transform_1, window_bounds = array<i64: 1, 1, 16>}, {transform_indices = @transform_2, window_bounds = array<i64: 1, 1, 16>}, {transform_indices = @transform_3, window_bounds = array<i64: 1, 16, 16>}, {transform_indices = @transform_4, window_bounds = array<i64: 1, 16, 16>}, {transform_indices = @transform_5, window_bounds = array<i64: 1, 16, 16>}, {transform_indices = @transform_6, window_bounds = array<i64: 1, 1, 16>}, {transform_indices = @transform_7, window_bounds = array<i64: 1, 1, 16>}, {transform_indices = @transform_8, window_bounds = array<i64: 1, 16, 16>}, {transform_indices = @transform_9, window_bounds = array<i64: 1, 1, 16>}, {transform_indices = @transform_10, window_bounds = array<i64: 1, 2, 8, 16>}]} {
    %c0_i32 = arith.constant 0 : i32
    %0 = arith.cmpi eq, %arg1, %c0_i32 : i32
    %1 = arith.extui %0 : i1 to i32
    %c0_i32_0 = arith.constant 0 : i32
    %2 = arith.cmpi ne, %1, %c0_i32_0 : i32
    scf.if %2 {
      %c0_42 = arith.constant 0 : index
      %c0_43 = arith.constant 0 : index
      %c0_44 = arith.constant 0 : index
      %c0_45 = arith.constant 0 : index
      %89 = vector.load %arg2[%c0_42, %c0_43, %c0_44, %c0_45] : memref<1x2x8x16xf32, #tpu.memory_space<vmem>>, vector<1x2x8x16xf32>
      %90 = vector.shape_cast %89 : vector<1x2x8x16xf32> to vector<2x8x16xf32>
      %c0_46 = arith.constant 0 : index
      %c0_47 = arith.constant 0 : index
      %c0_48 = arith.constant 0 : index
      %91 = vector.load %arg3[%c0_46, %c0_47, %c0_48] : memref<1x1x16xf32, #tpu.memory_space<vmem>>, vector<1x1x16xf32>
      %92 = vector.shape_cast %91 : vector<1x1x16xf32> to vector<1x16xf32>
      %c0_49 = arith.constant 0 : index
      %c0_50 = arith.constant 0 : index
      %c0_51 = arith.constant 0 : index
      %93 = vector.load %arg4[%c0_49, %c0_50, %c0_51] : memref<1x1x16xf32, #tpu.memory_space<vmem>>, vector<1x1x16xf32>
      %94 = vector.shape_cast %93 : vector<1x1x16xf32> to vector<1x16xf32>
      %cst_52 = arith.constant dense<0.000000e+00> : vector<2x8xf32>
      %95 = vector.multi_reduction <add>, %90, %cst_52 [2] : vector<2x8x16xf32> to vector<2x8xf32>
      %96 = vector.shape_cast %95 : vector<2x8xf32> to vector<2x8x1xf32>
      %cst_53 = arith.constant 1.600000e+01 : f32
      %97 = vector.broadcast %cst_53 : f32 to vector<2x8x1xf32>
      %98 = arith.divf %96, %97 : vector<2x8x1xf32>
      %99 = vector.broadcast %98 : vector<2x8x1xf32> to vector<2x8x16xf32>
      %100 = arith.subf %90, %99 : vector<2x8x16xf32>
      %101 = vector.broadcast %98 : vector<2x8x1xf32> to vector<2x8x16xf32>
      %102 = arith.subf %90, %101 : vector<2x8x16xf32>
      %103 = arith.mulf %100, %102 : vector<2x8x16xf32>
      %cst_54 = arith.constant dense<0.000000e+00> : vector<2x8xf32>
      %104 = vector.multi_reduction <add>, %103, %cst_54 [2] : vector<2x8x16xf32> to vector<2x8xf32>
      %105 = vector.shape_cast %104 : vector<2x8xf32> to vector<2x8x1xf32>
      %cst_55 = arith.constant 1.600000e+01 : f32
      %106 = vector.broadcast %cst_55 : f32 to vector<2x8x1xf32>
      %107 = arith.divf %105, %106 : vector<2x8x1xf32>
      %108 = vector.broadcast %98 : vector<2x8x1xf32> to vector<2x8x16xf32>
      %109 = arith.subf %90, %108 : vector<2x8x16xf32>
      %cst_56 = arith.constant 9.99999974E-6 : f32
      %110 = vector.broadcast %cst_56 : f32 to vector<2x8x1xf32>
      %111 = arith.addf %107, %110 : vector<2x8x1xf32>
      %112 = math.rsqrt %111 : vector<2x8x1xf32>
      %113 = vector.broadcast %112 : vector<2x8x1xf32> to vector<2x8x16xf32>
      %114 = arith.mulf %109, %113 : vector<2x8x16xf32>
      %115 = vector.shape_cast %92 : vector<1x16xf32> to vector<1x1x16xf32>
      %116 = vector.broadcast %115 : vector<1x1x16xf32> to vector<2x8x16xf32>
      %117 = arith.mulf %114, %116 : vector<2x8x16xf32>
      %118 = vector.shape_cast %94 : vector<1x16xf32> to vector<1x1x16xf32>
      %119 = vector.broadcast %118 : vector<1x1x16xf32> to vector<2x8x16xf32>
      %120 = arith.addf %117, %119 : vector<2x8x16xf32>
      %121 = arith.truncf %120 : vector<2x8x16xf32> to vector<2x8x16xbf16>
      %c0_57 = arith.constant 0 : index
      %c0_58 = arith.constant 0 : index
      %c0_59 = arith.constant 0 : index
      %122 = vector.load %arg13[%c0_57, %c0_58, %c0_59] : memref<2x8x16xbf16, #tpu.memory_space<vmem>>, vector<2x8x16xbf16>
      tpu.vector_store %arg13[%c0_57, %c0_58, %c0_59], %121 {strides = array<i32>} : memref<2x8x16xbf16, #tpu.memory_space<vmem>>, vector<2x8x16xbf16>,
      %123 = vector.shape_cast %121 : vector<2x8x16xbf16> to vector<16x16xbf16>
      %c0_60 = arith.constant 0 : index
      %c0_61 = arith.constant 0 : index
      %c0_62 = arith.constant 0 : index
      %124 = vector.load %arg6[%c0_60, %c0_61, %c0_62] : memref<1x16x16xbf16, #tpu.memory_space<vmem>>, vector<1x16x16xbf16>
      %125 = vector.shape_cast %124 : vector<1x16x16xbf16> to vector<16x16xbf16>
      %cst_63 = arith.constant dense<0.000000e+00> : vector<16x16xf32>
      %126 = tpu.matmul %123, %125, %cst_63 {dimension_numbers = #tpu.dot_dimension_numbers<[1], [0], [0], [1], [0, 0, 1, 1], [], []>} : vector<16x16xbf16>, vector<16x16xbf16>, vector<16x16xf32> -> vector<16x16xf32>
      %127 = arith.truncf %126 : vector<16x16xf32> to vector<16x16xbf16>
      %128 = vector.shape_cast %127 : vector<16x16xbf16> to vector<2x8x16xbf16>
      %c0_64 = arith.constant 0 : index
      %c0_65 = arith.constant 0 : index
      %c0_66 = arith.constant 0 : index
      %129 = vector.load %arg14[%c0_64, %c0_65, %c0_66] : memref<2x8x16xbf16, #tpu.memory_space<vmem>>, vector<2x8x16xbf16>
      tpu.vector_store %arg14[%c0_64, %c0_65, %c0_66], %128 {strides = array<i32>} : memref<2x8x16xbf16, #tpu.memory_space<vmem>>, vector<2x8x16xbf16>,
      %c0_67 = arith.constant 0 : index
      %c0_68 = arith.constant 0 : index
      %c0_69 = arith.constant 0 : index
      %130 = vector.load %arg7[%c0_67, %c0_68, %c0_69] : memref<1x16x16xbf16, #tpu.memory_space<vmem>>, vector<1x16x16xbf16>
      %131 = vector.shape_cast %130 : vector<1x16x16xbf16> to vector<16x16xbf16>
      %cst_70 = arith.constant dense<0.000000e+00> : vector<16x16xf32>
      %132 = tpu.matmul %123, %131, %cst_70 {dimension_numbers = #tpu.dot_dimension_numbers<[1], [0], [0], [1], [0, 0, 1, 1], [], []>} : vector<16x16xbf16>, vector<16x16xbf16>, vector<16x16xf32> -> vector<16x16xf32>
      %133 = arith.truncf %132 : vector<16x16xf32> to vector<16x16xbf16>
      %134 = vector.shape_cast %133 : vector<16x16xbf16> to vector<2x8x16xbf16>
      %c0_71 = arith.constant 0 : index
      %c0_72 = arith.constant 0 : index
      %c0_73 = arith.constant 0 : index
      %135 = vector.load %arg15[%c0_71, %c0_72, %c0_73] : memref<2x8x16xbf16, #tpu.memory_space<vmem>>, vector<2x8x16xbf16>
      tpu.vector_store %arg15[%c0_71, %c0_72, %c0_73], %134 {strides = array<i32>} : memref<2x8x16xbf16, #tpu.memory_space<vmem>>, vector<2x8x16xbf16>,
    } else {
    }
    %c8_i32 = arith.constant 8 : i32
    %3 = arith.muli %arg1, %c8_i32 : i32
    %4 = tpu.assume_multiple %3, 8 : i32
    %c0 = arith.constant 0 : index
    %c0_1 = arith.constant 0 : index
    %5 = arith.index_cast %4 : i32 to index
    %c0_2 = arith.constant 0 : index
    %6 = vector.load %arg2[%c0, %c0_1, %5, %c0_2] : memref<1x2x8x16xf32, #tpu.memory_space<vmem>>, vector<1x2x8x16xf32>
    %7 = vector.shape_cast %6 : vector<1x2x8x16xf32> to vector<2x8x16xf32>
    %c0_3 = arith.constant 0 : index
    %8 = arith.index_cast %4 : i32 to index
    %c0_4 = arith.constant 0 : index
    %9 = vector.load %arg13[%c0_3, %8, %c0_4] : memref<2x8x16xbf16, #tpu.memory_space<vmem>>, vector<2x8x16xbf16>
    %10 = vector.shape_cast %9 : vector<2x8x16xbf16> to vector<16x16xbf16>
    %c0_5 = arith.constant 0 : index
    %c0_6 = arith.constant 0 : index
    %c0_7 = arith.constant 0 : index
    %11 = vector.load %arg5[%c0_5, %c0_6, %c0_7] : memref<1x16x16xbf16, #tpu.memory_space<vmem>>, vector<1x16x16xbf16>
    %12 = vector.shape_cast %11 : vector<1x16x16xbf16> to vector<16x16xbf16>
    %cst = arith.constant dense<0.000000e+00> : vector<16x16xf32>
    %13 = tpu.matmul %10, %12, %cst {dimension_numbers = #tpu.dot_dimension_numbers<[1], [0], [0], [1], [0, 0, 1, 1], [], []>} : vector<16x16xbf16>, vector<16x16xbf16>, vector<16x16xf32> -> vector<16x16xf32>
    %cst_8 = arith.constant 2.500000e-01 : f32
    %14 = vector.broadcast %cst_8 : f32 to vector<16x16xf32>
    %15 = arith.mulf %13, %14 : vector<16x16xf32>
    %16 = arith.truncf %15 : vector<16x16xf32> to vector<16x16xbf16>
    %17 = vector.shape_cast %16 : vector<16x16xbf16> to vector<2x8x16xbf16>
    %c0_9 = arith.constant 0 : index
    %c0_10 = arith.constant 0 : index
    %c0_11 = arith.constant 0 : index
    %18 = vector.load %arg14[%c0_9, %c0_10, %c0_11] : memref<2x8x16xbf16, #tpu.memory_space<vmem>>, vector<2x8x16xbf16>
    "tpu.trace_start"() <{level = 10 : i32, message = "btd,bsd->bts"}> : () -> ()
    %cst_12 = arith.constant dense<0.000000e+00> : vector<2x8x8xf32>
    %19 = tpu.matmul %17, %18, %cst_12 {dimension_numbers = #tpu.dot_dimension_numbers<[2], [2], [1], [1], [0, 0, 0, 1, 1, 1], [0], [0]>} : vector<2x8x16xbf16>, vector<2x8x16xbf16>, vector<2x8x8xf32> -> vector<2x8x8xf32>
    "tpu.trace_stop"() : () -> ()
    %20 = tpu.iota {dimensions = array<i32: 0>} : vector<8x8xi32>
    %21 = vector.broadcast %4 : i32 to vector<8x8xi32>
    %22 = arith.addi %21, %20 : vector<8x8xi32>
    %23 = tpu.iota {dimensions = array<i32: 1>} : vector<8x8xi32>
    %24 = arith.cmpi sle, %23, %22 : vector<8x8xi32>
    %25 = vector.shape_cast %24 : vector<8x8xi1> to vector<1x8x8xi1>
    %cst_13 = arith.constant -1.000000e+30 : f32
    %26 = vector.shape_cast %25 : vector<1x8x8xi1> to vector<1x8x8xi1>
    %27 = vector.broadcast %26 : vector<1x8x8xi1> to vector<2x8x8xi1>
    %28 = vector.broadcast %cst_13 : f32 to vector<2x8x8xf32>
    %29 = arith.select %27, %19, %28 : vector<2x8x8xi1>, vector<2x8x8xf32>
    %cst_14 = arith.constant dense<0xFF800000> : vector<2x8xf32>
    %30 = vector.multi_reduction <maximumf>, %29, %cst_14 [2] : vector<2x8x8xf32> to vector<2x8xf32>
    %31 = vector.shape_cast %30 : vector<2x8xf32> to vector<2x8x1xf32>
    %32 = vector.broadcast %31 : vector<2x8x1xf32> to vector<2x8x8xf32>
    %33 = arith.subf %29, %32 : vector<2x8x8xf32>
    %34 = math.exp %33 : vector<2x8x8xf32>
    %cst_15 = arith.constant dense<0.000000e+00> : vector<2x8xf32>
    %35 = vector.multi_reduction <add>, %34, %cst_15 [2] : vector<2x8x8xf32> to vector<2x8xf32>
    %36 = vector.shape_cast %35 : vector<2x8xf32> to vector<2x8x1xf32>
    %37 = tpu.reciprocal %36 {approx = true} : vector<2x8x1xf32> -> vector<2x8x1xf32>
    %38 = vector.broadcast %37 : vector<2x8x1xf32> to vector<2x8x8xf32>
    %39 = arith.mulf %34, %38 : vector<2x8x8xf32>
    %40 = arith.truncf %39 : vector<2x8x8xf32> to vector<2x8x8xbf16>
    %c0_16 = arith.constant 0 : index
    %c0_17 = arith.constant 0 : index
    %c0_18 = arith.constant 0 : index
    %41 = vector.load %arg15[%c0_16, %c0_17, %c0_18] : memref<2x8x16xbf16, #tpu.memory_space<vmem>>, vector<2x8x16xbf16>
    "tpu.trace_start"() <{level = 10 : i32, message = "bts,bsd->btd"}> : () -> ()
    %cst_19 = arith.constant dense<0.000000e+00> : vector<2x8x16xf32>
    %42 = tpu.matmul %40, %41, %cst_19 {dimension_numbers = #tpu.dot_dimension_numbers<[2], [1], [1], [2], [0, 0, 0, 1, 1, 2], [0], [0]>} : vector<2x8x8xbf16>, vector<2x8x16xbf16>, vector<2x8x16xf32> -> vector<2x8x16xf32>
    "tpu.trace_stop"() : () -> ()
    %43 = arith.addf %7, %42 : vector<2x8x16xf32>
    %c0_20 = arith.constant 0 : index
    %c0_21 = arith.constant 0 : index
    %c0_22 = arith.constant 0 : index
    %44 = vector.load %arg8[%c0_20, %c0_21, %c0_22] : memref<1x1x16xf32, #tpu.memory_space<vmem>>, vector<1x1x16xf32>
    %45 = vector.shape_cast %44 : vector<1x1x16xf32> to vector<1x16xf32>
    %c0_23 = arith.constant 0 : index
    %c0_24 = arith.constant 0 : index
    %c0_25 = arith.constant 0 : index
    %46 = vector.load %arg9[%c0_23, %c0_24, %c0_25] : memref<1x1x16xf32, #tpu.memory_space<vmem>>, vector<1x1x16xf32>
    %47 = vector.shape_cast %46 : vector<1x1x16xf32> to vector<1x16xf32>
    %cst_26 = arith.constant dense<0.000000e+00> : vector<2x8xf32>
    %48 = vector.multi_reduction <add>, %43, %cst_26 [2] : vector<2x8x16xf32> to vector<2x8xf32>
    %49 = vector.shape_cast %48 : vector<2x8xf32> to vector<2x8x1xf32>
    %cst_27 = arith.constant 1.600000e+01 : f32
    %50 = vector.broadcast %cst_27 : f32 to vector<2x8x1xf32>
    %51 = arith.divf %49, %50 : vector<2x8x1xf32>
    %52 = vector.broadcast %51 : vector<2x8x1xf32> to vector<2x8x16xf32>
    %53 = arith.subf %43, %52 : vector<2x8x16xf32>
    %54 = vector.broadcast %51 : vector<2x8x1xf32> to vector<2x8x16xf32>
    %55 = arith.subf %43, %54 : vector<2x8x16xf32>
    %56 = arith.mulf %53, %55 : vector<2x8x16xf32>
    %cst_28 = arith.constant dense<0.000000e+00> : vector<2x8xf32>
    %57 = vector.multi_reduction <add>, %56, %cst_28 [2] : vector<2x8x16xf32> to vector<2x8xf32>
    %58 = vector.shape_cast %57 : vector<2x8xf32> to vector<2x8x1xf32>
    %cst_29 = arith.constant 1.600000e+01 : f32
    %59 = vector.broadcast %cst_29 : f32 to vector<2x8x1xf32>
    %60 = arith.divf %58, %59 : vector<2x8x1xf32>
    %61 = vector.broadcast %51 : vector<2x8x1xf32> to vector<2x8x16xf32>
    %62 = arith.subf %43, %61 : vector<2x8x16xf32>
    %cst_30 = arith.constant 9.99999974E-6 : f32
    %63 = vector.broadcast %cst_30 : f32 to vector<2x8x1xf32>
    %64 = arith.addf %60, %63 : vector<2x8x1xf32>
    %65 = math.rsqrt %64 : vector<2x8x1xf32>
    %66 = vector.broadcast %65 : vector<2x8x1xf32> to vector<2x8x16xf32>
    %67 = arith.mulf %62, %66 : vector<2x8x16xf32>
    %68 = vector.shape_cast %45 : vector<1x16xf32> to vector<1x1x16xf32>
    %69 = vector.broadcast %68 : vector<1x1x16xf32> to vector<2x8x16xf32>
    %70 = arith.mulf %67, %69 : vector<2x8x16xf32>
    %71 = vector.shape_cast %47 : vector<1x16xf32> to vector<1x1x16xf32>
    %72 = vector.broadcast %71 : vector<1x1x16xf32> to vector<2x8x16xf32>
    %73 = arith.addf %70, %72 : vector<2x8x16xf32>
    %74 = arith.truncf %73 : vector<2x8x16xf32> to vector<2x8x16xbf16>
    %75 = vector.shape_cast %74 : vector<2x8x16xbf16> to vector<16x16xbf16>
    %c0_31 = arith.constant 0 : index
    %c0_32 = arith.constant 0 : index
    %c0_33 = arith.constant 0 : index
    %76 = vector.load %arg10[%c0_31, %c0_32, %c0_33] : memref<1x16x16xbf16, #tpu.memory_space<vmem>>, vector<1x16x16xbf16>
    %77 = vector.shape_cast %76 : vector<1x16x16xbf16> to vector<16x16xbf16>
    %cst_34 = arith.constant dense<0.000000e+00> : vector<16x16xf32>
    %78 = tpu.matmul %75, %77, %cst_34 {dimension_numbers = #tpu.dot_dimension_numbers<[1], [0], [0], [1], [0, 0, 1, 1], [], []>} : vector<16x16xbf16>, vector<16x16xbf16>, vector<16x16xf32> -> vector<16x16xf32>
    %79 = vector.shape_cast %78 : vector<16x16xf32> to vector<2x8x16xf32>
    %80 = arith.addf %43, %79 : vector<2x8x16xf32>
    %c0_35 = arith.constant 0 : index
    %c0_36 = arith.constant 0 : index
    %c0_37 = arith.constant 0 : index
    %81 = vector.load %arg11[%c0_35, %c0_36, %c0_37] : memref<1x1x16xf32, #tpu.memory_space<vmem>>, vector<1x1x16xf32>
    %82 = vector.shape_cast %81 : vector<1x1x16xf32> to vector<1x16xf32>
    %83 = vector.shape_cast %82 : vector<1x16xf32> to vector<1x1x16xf32>
    %84 = vector.broadcast %83 : vector<1x1x16xf32> to vector<2x8x16xf32>
    %85 = arith.addf %80, %84 : vector<2x8x16xf32>
    %c0_38 = arith.constant 0 : index
    %c0_39 = arith.constant 0 : index
    %c0_40 = arith.constant 0 : index
    %c0_41 = arith.constant 0 : index
    %86 = vector.load %arg12[%c0_38, %c0_39, %c0_40, %c0_41] : memref<1x2x8x16xf32, #tpu.memory_space<vmem>>, vector<1x2x8x16xf32>
    %87 = vector.shape_cast %86 : vector<1x2x8x16xf32> to vector<2x8x16xf32>
    %88 = vector.shape_cast %85 : vector<2x8x16xf32> to vector<1x2x8x16xf32>
    tpu.vector_store %arg12[%c0_38, %c0_39, %c0_40, %c0_41], %88 {strides = array<i32>} : memref<1x2x8x16xf32, #tpu.memory_space<vmem>>, vector<1x2x8x16xf32>,
    return
  }
  func.func @transform_0(%arg0: i32, %arg1: i32) -> (i32, i32, i32, i32) {
    %c0_i32 = arith.constant 0 : i32
    %c0_i32_0 = arith.constant 0 : i32
    %c0_i32_1 = arith.constant 0 : i32
    %c0_i32_2 = arith.constant 0 : i32
    return %arg0, %c0_i32, %c0_i32_0, %c0_i32_1 : i32, i32, i32, i32
  }
  func.func @transform_1(%arg0: i32, %arg1: i32) -> (i32, i32, i32) {
    %c0_i32 = arith.constant 0 : i32
    %c0_i32_0 = arith.constant 0 : i32
    %c0_i32_1 = arith.constant 0 : i32
    return %arg0, %c0_i32, %c0_i32_0 : i32, i32, i32
  }
  func.func @transform_2(%arg0: i32, %arg1: i32) -> (i32, i32, i32) {
    %c0_i32 = arith.constant 0 : i32
    %c0_i32_0 = arith.constant 0 : i32
    %c0_i32_1 = arith.constant 0 : i32
    return %arg0, %c0_i32, %c0_i32_0 : i32, i32, i32
  }
  func.func @transform_3(%arg0: i32, %arg1: i32) -> (i32, i32, i32) {
    %c0_i32 = arith.constant 0 : i32
    %c0_i32_0 = arith.constant 0 : i32
    %c0_i32_1 = arith.constant 0 : i32
    return %arg0, %c0_i32, %c0_i32_0 : i32, i32, i32
  }
  func.func @transform_4(%arg0: i32, %arg1: i32) -> (i32, i32, i32) {
    %c0_i32 = arith.constant 0 : i32
    %c0_i32_0 = arith.constant 0 : i32
    %c0_i32_1 = arith.constant 0 : i32
    return %arg0, %c0_i32, %c0_i32_0 : i32, i32, i32
  }
  func.func @transform_5(%arg0: i32, %arg1: i32) -> (i32, i32, i32) {
    %c0_i32 = arith.constant 0 : i32
    %c0_i32_0 = arith.constant 0 : i32
    %c0_i32_1 = arith.constant 0 : i32
    return %arg0, %c0_i32, %c0_i32_0 : i32, i32, i32
  }
  func.func @transform_6(%arg0: i32, %arg1: i32) -> (i32, i32, i32) {
    %c0_i32 = arith.constant 0 : i32
    %c0_i32_0 = arith.constant 0 : i32
    %c0_i32_1 = arith.constant 0 : i32
    return %arg0, %c0_i32, %c0_i32_0 : i32, i32, i32
  }
  func.func @transform_7(%arg0: i32, %arg1: i32) -> (i32, i32, i32) {
    %c0_i32 = arith.constant 0 : i32
    %c0_i32_0 = arith.constant 0 : i32
    %c0_i32_1 = arith.constant 0 : i32
    return %arg0, %c0_i32, %c0_i32_0 : i32, i32, i32
  }
  func.func @transform_8(%arg0: i32, %arg1: i32) -> (i32, i32, i32) {
    %c0_i32 = arith.constant 0 : i32
    %c0_i32_0 = arith.constant 0 : i32
    %c0_i32_1 = arith.constant 0 : i32
    return %arg0, %c0_i32, %c0_i32_0 : i32, i32, i32
  }
  func.func @transform_9(%arg0: i32, %arg1: i32) -> (i32, i32, i32) {
    %c0_i32 = arith.constant 0 : i32
    %c0_i32_0 = arith.constant 0 : i32
    %c0_i32_1 = arith.constant 0 : i32
    return %arg0, %c0_i32, %c0_i32_0 : i32, i32, i32
  }
  func.func @transform_10(%arg0: i32, %arg1: i32) -> (i32, i32, i32, i32) {
    %c0_i32 = arith.constant 0 : i32
    %c0_i32_0 = arith.constant 0 : i32
    %c0_i32_1 = arith.constant 0 : i32
    return %arg0, %c0_i32, %arg1, %c0_i32_0 : i32, i32, i32, i32
  }
}

module attributes {stable_mosaic.version = 11 : i64} {
  func.func @_lm_head_kernel(%arg0: i32, %arg1: i32, %arg2: memref<16x32xbf16, #tpu.memory_space<vmem>>, %arg3: memref<32x128xbf16, #tpu.memory_space<vmem>>, %arg4: memref<1x128xf32, #tpu.memory_space<vmem>>, %arg5: memref<16x128xf32, #tpu.memory_space<vmem>>) attributes {dimension_semantics = [#tpu.dimension_semantics<parallel>, #tpu.dimension_semantics<parallel>], iteration_bounds = array<i64: 1, 1>, scalar_prefetch = 0 : i64, scratch_operands = 0 : i64, tpu.core_type = #tpu.core_type<tc>, window_params = [{transform_indices = @transform_0, window_bounds = array<i64: 16, 32>}, {transform_indices = @transform_1, window_bounds = array<i64: 32, 128>}, {transform_indices = @transform_2, window_bounds = array<i64: 1, 128>}, {transform_indices = @transform_3, window_bounds = array<i64: 16, 128>}]} {
    %c0 = arith.constant 0 : index
    %c0_0 = arith.constant 0 : index
    %0 = vector.load %arg2[%c0, %c0_0] : memref<16x32xbf16, #tpu.memory_space<vmem>>, vector<16x32xbf16>
    %c0_1 = arith.constant 0 : index
    %c0_2 = arith.constant 0 : index
    %1 = vector.load %arg3[%c0_1, %c0_2] : memref<32x128xbf16, #tpu.memory_space<vmem>>, vector<32x128xbf16>
    %cst = arith.constant dense<0.000000e+00> : vector<16x128xf32>
    %2 = tpu.matmul %0, %1, %cst {dimension_numbers = #tpu.dot_dimension_numbers<[1], [0], [0], [1], [0, 0, 1, 1], [], []>} : vector<16x32xbf16>, vector<32x128xbf16>, vector<16x128xf32> -> vector<16x128xf32>
    %c0_3 = arith.constant 0 : index
    %c0_4 = arith.constant 0 : index
    %3 = vector.load %arg4[%c0_3, %c0_4] : memref<1x128xf32, #tpu.memory_space<vmem>>, vector<1x128xf32>
    %4 = vector.broadcast %3 : vector<1x128xf32> to vector<16x128xf32>
    %5 = arith.addf %2, %4 : vector<16x128xf32>
    %c0_5 = arith.constant 0 : index
    %c0_6 = arith.constant 0 : index
    %6 = vector.load %arg5[%c0_5, %c0_6] : memref<16x128xf32, #tpu.memory_space<vmem>>, vector<16x128xf32>
    tpu.vector_store %arg5[%c0_5, %c0_6], %5 {strides = array<i32>} : memref<16x128xf32, #tpu.memory_space<vmem>>, vector<16x128xf32>,
    return
  }
  func.func @transform_0(%arg0: i32, %arg1: i32) -> (i32, i32) {
    %c0_i32 = arith.constant 0 : i32
    %c0_i32_0 = arith.constant 0 : i32
    return %arg1, %c0_i32 : i32, i32
  }
  func.func @transform_1(%arg0: i32, %arg1: i32) -> (i32, i32) {
    %c0_i32 = arith.constant 0 : i32
    %c0_i32_0 = arith.constant 0 : i32
    return %c0_i32, %arg0 : i32, i32
  }
  func.func @transform_2(%arg0: i32, %arg1: i32) -> (i32, i32) {
    %c0_i32 = arith.constant 0 : i32
    %c0_i32_0 = arith.constant 0 : i32
    return %c0_i32, %arg0 : i32, i32
  }
  func.func @transform_3(%arg0: i32, %arg1: i32) -> (i32, i32) {
    %c0_i32 = arith.constant 0 : i32
    return %arg1, %arg0 : i32, i32
  }
}

</mosaic_0001>

<llo_original>
// kernel: nanogpt_forward.3
$region0: #{nanogpt_forward.3}
  #allocation0 [shape = 'u32[]', space=smem, size = 0x4, offset = 0x4, fixed_abs, tag = 'smem constant byte address 0x4 - core index']
  #allocation1 [shape = 'u32[144,128]{1,0:T(1,128)}', space=vmem, size = 0x12000, scoped, tag = 'internal scratch']
  %s0 = inlined_call_operand.vmem [shape: bf16[16,32], index: 0, kind: input, shape index: {}]
  %s1 = inlined_call_operand.vmem [shape: bf16[32,128], index: 1, kind: input, shape index: {}]
  %s2 = inlined_call_operand.vmem [shape: f32[1,128], index: 2, kind: input, shape index: {}]
  %s3 = inlined_call_operand.vmem [shape: f32[16,128], index: 3, kind: output, shape index: {}]
  %s4 = sld [smem:[#allocation0]]
  $region22: #{nanogpt_forward.3} parent=0
    _
  %s6 = ssub.s32 1, %s4
  %s7 = scalar_select 0, %s6, %s4
  // Predicated region
  $region2: #{nanogpt_forward.3} parent=0 // pred_check
    _
  $region3: #{nanogpt_forward.3} parent=0 // pred_check_branch
    %9 = sbr.rel (0) target = $region5
  $region4: #{nanogpt_forward.3} parent=0 // pred_region
    _
  $region5: #{nanogpt_forward.3} parent=0 // pred_fallthru
    _
  // Predicated region
  $region6: #{nanogpt_forward.3} parent=0 // pred_check
    _
  $region7: #{nanogpt_forward.3} parent=0 // pred_check_branch
    %11 = sbr.rel (0) target = $region9
  $region8: #{nanogpt_forward.3} parent=0 // pred_region
    _
  $region9: #{nanogpt_forward.3} parent=0 // pred_fallthru
    _
  // Predicated region
  $region10: #{nanogpt_forward.3} parent=0 // pred_check
    _
  $region11: #{nanogpt_forward.3} parent=0 // pred_check_branch
    %13 = sbr.rel (0) target = $region13
  $region12: #{nanogpt_forward.3} parent=0 // pred_region
    _
  $region13: #{nanogpt_forward.3} parent=0 // pred_fallthru
    _
  %v15 = vld [vmem:[%s0] sm:$0xf]
  %v16 = vld [vmem:[%s0 + $0x4] sm:$0xf]
  %v17 = vld [vmem:[%s1] sm:$0xf]
  %v18 = vld [vmem:[%s1 + $0x4] sm:$0xf]
  %v19 = vld [vmem:[%s1 + $0x8] sm:$0xf]
  %v20 = vld [vmem:[%s1 + $0xc] sm:$0xf]
  %v21 = vld [vmem:[%s2] sm:$0x1]
  %v23 = vlaneseq
  %v24 = vshrl.u32 %v23, 7
  %v25 = vsub.s32 0, %v24
  %v26 = vrot.slane %v21, %v25
  %v30 = vunpack.c.l.b16 %v15
  %v31 = vunpack.c.l.b16 %v16
  %v32 = vpack.c.b16 %v31, %v30
  %v37 = vunpack.c.l.b16 %v17
  %v38 = vunpack.c.l.b16 %v18
  %v39 = vunpack.c.l.b16 %v19
  %v40 = vunpack.c.l.b16 %v20
  %v41 = vpack.c.b16 %v38, %v37
  %v42 = vpack.c.b16 %v40, %v39
  %vm45 = vcmask 261120
  %v47 = vsel %vm45, %v32, 0
  %49 = vmatprep.subr.bf16.mxu0 0
  %50 = vmatpush1.bf16.msra.mxu0 %v41
  %51 = vmatprep.subr.bf16.mxu0 0
  %52 = vmatpush1.bf16.msra.mxu0 %v42
  %53 = vmatprep.subr.bf16.mxu0 0
  %54 = vmatpush1.bf16.msra.mxu0 0
  %55 = vmatprep.subr.bf16.mxu0 0
  %56 = vmatpush1.bf16.msra.mxu0 0
  %57 = vmatprep.subr.bf16.mxu0 0
  %58 = vmatpush1.bf16.msra.mxu0 0
  %59 = vmatprep.subr.bf16.mxu0 0
  %60 = vmatpush1.bf16.msra.mxu0 0
  %61 = vmatprep.subr.bf16.mxu0 0
  %62 = vmatpush1.bf16.msra.mxu0 0
  %63 = vmatprep.subr.bf16.mxu0 0
  %64 = vmatpush1.bf16.msra.mxu0 0
  %65 = vmatprep.subr.bf16.mxu0 0
  %66 = vmatpush1.bf16.msra.mxu0 0
  %67 = vmatprep.subr.bf16.mxu0 0
  %68 = vmatpush1.bf16.msra.mxu0 0
  %69 = vmatprep.subr.bf16.mxu0 0
  %70 = vmatpush1.bf16.msra.mxu0 0
  %71 = vmatprep.subr.bf16.mxu0 0
  %72 = vmatpush1.bf16.msra.mxu0 0
  %73 = vmatprep.subr.bf16.mxu0 0
  %74 = vmatpush1.bf16.msra.mxu0 0
  %75 = vmatprep.subr.bf16.mxu0 0
  %76 = vmatpush1.bf16.msra.mxu0 0
  %77 = vmatprep.subr.bf16.mxu0 0
  %78 = vmatpush1.bf16.msra.mxu0 0
  %79 = vmatprep.subr.bf16.mxu0 0
  %80 = vmatpush1.bf16.msra.mxu0 0
  %81 = vmatprep.mubr.bf16.mxu0 0
  %82 = vmatmul.mubr.bf16.gmra.mrb[0].mxu0 %v47
  %v83 = vpop.f32.mrb[0].mxu0
  %v84 = vadd.f32 %v26, %v83
  %v85 = vpop.f32.mrb[0].mxu0
  %v86 = vpop.f32.mrb[0].mxu0
  %v87 = vadd.f32 %v26, %v86
  %v88 = vpop.f32.mrb[0].mxu0
  %89 = vdwg.mxu0
  %90 = vst [vmem:[%s3] sm:$0xff] %v84
  %91 = vst [vmem:[%s3 + $0x8] sm:$0xff] %v87
  // Predicated region
  $region14: #{nanogpt_forward.3} parent=0 // pred_check
    _
  $region15: #{nanogpt_forward.3} parent=0 // pred_check_branch
    %93 = sbr.rel (0) target = $region17
  $region16: #{nanogpt_forward.3} parent=0 // pred_region
    _
  $region17: #{nanogpt_forward.3} parent=0 // pred_fallthru
    _
  // Predicated region
  $region18: #{nanogpt_forward.3} parent=0 // pred_check
    _
  $region19: #{nanogpt_forward.3} parent=0 // pred_check_branch
    %95 = sbr.rel (0) target = $region21
  $region20: #{nanogpt_forward.3} parent=0 // pred_region
    _
  $region21: #{nanogpt_forward.3} parent=0 // pred_fallthru
    _

// kernel: nanogpt_forward.2
$region0: #{nanogpt_forward.2}
  #allocation0 [shape = 'u32[]', space=smem, size = 0x4, offset = 0x4, fixed_abs, tag = 'smem constant byte address 0x4 - core index']
  #allocation1 [shape = 'u32[144,128]{1,0:T(1,128)}', space=vmem, size = 0x12000, scoped, tag = 'internal scratch']
  #allocation2 [shape = 'bf16[2,8,16]{2,1,0:T(8,128)(2,1)}', space=vmem, size = 0x1000, scoped, tag = 'scratch operand']
  #allocation3 [shape = 'bf16[2,8,16]{2,1,0:T(8,128)(2,1)}', space=vmem, size = 0x1000, scoped, tag = 'scratch operand']
  #allocation4 [shape = 'bf16[2,8,16]{2,1,0:T(8,128)(2,1)}', space=vmem, size = 0x1000, scoped, tag = 'scratch operand']
  %s0 = inlined_call_operand.vmem [shape: f32[2,2,8,16], index: 0, kind: input, shape index: {}]
  %s1 = inlined_call_operand.vmem [shape: f32[2,1,16], index: 1, kind: input, shape index: {}]
  %s2 = inlined_call_operand.vmem [shape: f32[2,1,16], index: 2, kind: input, shape index: {}]
  %s3 = inlined_call_operand.vmem [shape: bf16[2,16,16], index: 3, kind: input, shape index: {}]
  %s4 = inlined_call_operand.vmem [shape: bf16[2,16,16], index: 4, kind: input, shape index: {}]
  %s5 = inlined_call_operand.vmem [shape: bf16[2,16,16], index: 5, kind: input, shape index: {}]
  %s6 = inlined_call_operand.vmem [shape: f32[2,1,16], index: 6, kind: input, shape index: {}]
  %s7 = inlined_call_operand.vmem [shape: f32[2,1,16], index: 7, kind: input, shape index: {}]
  %s8 = inlined_call_operand.vmem [shape: bf16[2,16,16], index: 8, kind: input, shape index: {}]
  %s9 = inlined_call_operand.vmem [shape: f32[2,1,16], index: 9, kind: input, shape index: {}]
  %s10 = inlined_call_operand.vmem [shape: f32[2,2,8,16], index: 10, kind: output, shape index: {}]
  %s11 = sld [smem:[#allocation0]]
  $region77: #{nanogpt_forward.2} parent=0
    _
  %s13 = ssub.s32 1, %s11
  %s14 = scalar_select 0, %s13, %s11
  loop: start=0, step=1, limit=4
  $region2: #{nanogpt_forward.2} parent=0 // loop_pre_header
    _
  $region3: #{nanogpt_forward.2} parent=0 // loop_header
    %s16 = sphi 0, %s20
    %p17 = scmp.ge.s32.totalorder %s16, 4
    %s23 = sphi 0, %s35
    %s24 = sphi 0, %s31
    %s25 = sphi 0, %s23
    %s26 = sphi 0, %s24
    %s27 = sphi 0, %s25
    %s28 = sphi 0, %s26
    %s38 = sphi 0, %s40
    %s41 = sphi 0, %s38
    %s42 = sphi 0, %s41
    %s58 = sphi 0, %s42
    %s64 = sphi 0, %s66
    %s67 = sphi 0, %s64
    %s68 = sphi 0, %s67
    %s84 = sphi 0, %s68
    %s90 = sphi 0, %s92
    %s93 = sphi 0, %s90
    %s94 = sphi 0, %s93
    %s110 = sphi 0, %s94
    %s116 = sphi 0, %s118
    %s119 = sphi 0, %s116
    %s120 = sphi 0, %s119
    %s136 = sphi 0, %s120
    %s142 = sphi 0, %s144
    %s145 = sphi 0, %s142
    %s146 = sphi 0, %s145
    %s162 = sphi 0, %s146
    %s168 = sphi 0, %s170
    %s171 = sphi 0, %s168
    %s172 = sphi 0, %s171
    %s188 = sphi 0, %s172
    %s194 = sphi 0, %s196
    %s197 = sphi 0, %s194
    %s198 = sphi 0, %s197
    %s214 = sphi 0, %s198
    %s220 = sphi 0, %s222
    %s223 = sphi 0, %s220
    %s224 = sphi 0, %s223
    %s240 = sphi 0, %s224
    %s246 = sphi 0, %s248
    %s249 = sphi 0, %s246
    %s250 = sphi 0, %s249
    %s266 = sphi 0, %s250
    %s272 = sphi 0, %s274
    %s275 = sphi 0, %s272
    %s276 = sphi 0, %s275
    %s292 = sphi 0, %s276
    %s300 = sphi 0, %s302
    %s303 = sphi 0, %s300
    %s304 = sphi 0, %s303
    %s320 = sphi 0, %s304
  $region4: #{nanogpt_forward.2} parent=0 // loop_header_branch
    %19 = sbr.rel (%p17) target = $region8
  $region5: #{nanogpt_forward.2} parent=0 // loop_body
    %s21 = ssub.s32 %s16, 1
    %s22 = ssub.s32 %s16, 2
    %s29 = sadd.s32 1, %s24
    %p30 = scmp.ge.s32.totalorder %s29, 1
    %s31 = scalar_select %p30, 0, %s29
    %s32 = sadd.s32 1, %s23
    %s33 = scalar_select %p30, %s32, %s23
    %p34 = scmp.ge.s32.totalorder %s33, 2
    %s35 = scalar_select %p34, 0, %s33
    %s36 = ssub.s32 %s23, %s35
    %p37 = scmp.eq.s32.totalorder %s36, 0
    %s39 = sadd.s32 %s38, 1
    %s40 = scalar_select %p37, %s38, %s39
    %p43 = pneg %p37
    %p44 = scmp.eq.s32.totalorder %s16, 1
    %p45 = por %p43, %p44
    %p46 = scmp.ne.s32.totalorder %s38, %s41
    %p47 = scmp.eq.s32.totalorder %s16, 0
    %p48 = por %p46, %p47
    %p49 = scmp.ne.s32.totalorder %s38, %s41
    %p50 = scmp.eq.s32.totalorder %s21, 1
    %p51 = por %p49, %p50
    %p52 = scmp.ne.s32.totalorder %s41, %s42
    %p53 = scmp.eq.s32.totalorder %s21, 0
    %p54 = por %p52, %p53
    %p55 = scmp.ne.s32.totalorder %s41, %s42
    %p56 = scmp.eq.s32.totalorder %s22, 1
    %p57 = por %p55, %p56
    %p59 = scmp.ne.s32.totalorder %s42, %s58
    %p60 = scmp.eq.s32.totalorder %s22, 0
    %p61 = por %p59, %p60
    %s62 = ssub.s32 %s23, %s35
    %p63 = scmp.eq.s32.totalorder %s62, 0
    %s65 = sadd.s32 %s64, 1
    %s66 = scalar_select %p63, %s64, %s65
    %p69 = pneg %p63
    %p70 = scmp.eq.s32.totalorder %s16, 1
    %p71 = por %p69, %p70
    %p72 = scmp.ne.s32.totalorder %s64, %s67
    %p73 = scmp.eq.s32.totalorder %s16, 0
    %p74 = por %p72, %p73
    %p75 = scmp.ne.s32.totalorder %s64, %s67
    %p76 = scmp.eq.s32.totalorder %s21, 1
    %p77 = por %p75, %p76
    %p78 = scmp.ne.s32.totalorder %s67, %s68
    %p79 = scmp.eq.s32.totalorder %s21, 0
    %p80 = por %p78, %p79
    %p81 = scmp.ne.s32.totalorder %s67, %s68
    %p82 = scmp.eq.s32.totalorder %s22, 1
    %p83 = por %p81, %p82
    %p85 = scmp.ne.s32.totalorder %s68, %s84
    %p86 = scmp.eq.s32.totalorder %s22, 0
    %p87 = por %p85, %p86
    %s88 = ssub.s32 %s23, %s35
    %p89 = scmp.eq.s32.totalorder %s88, 0
    %s91 = sadd.s32 %s90, 1
    %s92 = scalar_select %p89, %s90, %s91
    %p95 = pneg %p89
    %p96 = scmp.eq.s32.totalorder %s16, 1
    %p97 = por %p95, %p96
    %p98 = scmp.ne.s32.totalorder %s90, %s93
    %p99 = scmp.eq.s32.totalorder %s16, 0
    %p100 = por %p98, %p99
    %p101 = scmp.ne.s32.totalorder %s90, %s93
    %p102 = scmp.eq.s32.totalorder %s21, 1
    %p103 = por %p101, %p102
    %p104 = scmp.ne.s32.totalorder %s93, %s94
    %p105 = scmp.eq.s32.totalorder %s21, 0
    %p106 = por %p104, %p105
    %p107 = scmp.ne.s32.totalorder %s93, %s94
    %p108 = scmp.eq.s32.totalorder %s22, 1
    %p109 = por %p107, %p108
    %p111 = scmp.ne.s32.totalorder %s94, %s110
    %p112 = scmp.eq.s32.totalorder %s22, 0
    %p113 = por %p111, %p112
    %s114 = ssub.s32 %s23, %s35
    %p115 = scmp.eq.s32.totalorder %s114, 0
    %s117 = sadd.s32 %s116, 1
    %s118 = scalar_select %p115, %s116, %s117
    %p121 = pneg %p115
    %p122 = scmp.eq.s32.totalorder %s16, 1
    %p123 = por %p121, %p122
    %p124 = scmp.ne.s32.totalorder %s116, %s119
    %p125 = scmp.eq.s32.totalorder %s16, 0
    %p126 = por %p124, %p125
    %p127 = scmp.ne.s32.totalorder %s116, %s119
    %p128 = scmp.eq.s32.totalorder %s21, 1
    %p129 = por %p127, %p128
    %p130 = scmp.ne.s32.totalorder %s119, %s120
    %p131 = scmp.eq.s32.totalorder %s21, 0
    %p132 = por %p130, %p131
    %p133 = scmp.ne.s32.totalorder %s119, %s120
    %p134 = scmp.eq.s32.totalorder %s22, 1
    %p135 = por %p133, %p134
    %p137 = scmp.ne.s32.totalorder %s120, %s136
    %p138 = scmp.eq.s32.totalorder %s22, 0
    %p139 = por %p137, %p138
    %s140 = ssub.s32 %s23, %s35
    %p141 = scmp.eq.s32.totalorder %s140, 0
    %s143 = sadd.s32 %s142, 1
    %s144 = scalar_select %p141, %s142, %s143
    %p147 = pneg %p141
    %p148 = scmp.eq.s32.totalorder %s16, 1
    %p149 = por %p147, %p148
    %p150 = scmp.ne.s32.totalorder %s142, %s145
    %p151 = scmp.eq.s32.totalorder %s16, 0
    %p152 = por %p150, %p151
    %p153 = scmp.ne.s32.totalorder %s142, %s145
    %p154 = scmp.eq.s32.totalorder %s21, 1
    %p155 = por %p153, %p154
    %p156 = scmp.ne.s32.totalorder %s145, %s146
    %p157 = scmp.eq.s32.totalorder %s21, 0
    %p158 = por %p156, %p157
    %p159 = scmp.ne.s32.totalorder %s145, %s146
    %p160 = scmp.eq.s32.totalorder %s22, 1
    %p161 = por %p159, %p160
    %p163 = scmp.ne.s32.totalorder %s146, %s162
    %p164 = scmp.eq.s32.totalorder %s22, 0
    %p165 = por %p163, %p164
    %s166 = ssub.s32 %s23, %s35
    %p167 = scmp.eq.s32.totalorder %s166, 0
    %s169 = sadd.s32 %s168, 1
    %s170 = scalar_select %p167, %s168, %s169
    %p173 = pneg %p167
    %p174 = scmp.eq.s32.totalorder %s16, 1
    %p175 = por %p173, %p174
    %p176 = scmp.ne.s32.totalorder %s168, %s171
    %p177 = scmp.eq.s32.totalorder %s16, 0
    %p178 = por %p176, %p177
    %p179 = scmp.ne.s32.totalorder %s168, %s171
    %p180 = scmp.eq.s32.totalorder %s21, 1
    %p181 = por %p179, %p180
    %p182 = scmp.ne.s32.totalorder %s171, %s172
    %p183 = scmp.eq.s32.totalorder %s21, 0
    %p184 = por %p182, %p183
    %p185 = scmp.ne.s32.totalorder %s171, %s172
    %p186 = scmp.eq.s32.totalorder %s22, 1
    %p187 = por %p185, %p186
    %p189 = scmp.ne.s32.totalorder %s172, %s188
    %p190 = scmp.eq.s32.totalorder %s22, 0
    %p191 = por %p189, %p190
    %s192 = ssub.s32 %s23, %s35
    %p193 = scmp.eq.s32.totalorder %s192, 0
    %s195 = sadd.s32 %s194, 1
    %s196 = scalar_select %p193, %s194, %s195
    %p199 = pneg %p193
    %p200 = scmp.eq.s32.totalorder %s16, 1
    %p201 = por %p199, %p200
    %p202 = scmp.ne.s32.totalorder %s194, %s197
    %p203 = scmp.eq.s32.totalorder %s16, 0
    %p204 = por %p202, %p203
    %p205 = scmp.ne.s32.totalorder %s194, %s197
    %p206 = scmp.eq.s32.totalorder %s21, 1
    %p207 = por %p205, %p206
    %p208 = scmp.ne.s32.totalorder %s197, %s198
    %p209 = scmp.eq.s32.totalorder %s21, 0
    %p210 = por %p208, %p209
    %p211 = scmp.ne.s32.totalorder %s197, %s198
    %p212 = scmp.eq.s32.totalorder %s22, 1
    %p213 = por %p211, %p212
    %p215 = scmp.ne.s32.totalorder %s198, %s214
    %p216 = scmp.eq.s32.totalorder %s22, 0
    %p217 = por %p215, %p216
    %s218 = ssub.s32 %s23, %s35
    %p219 = scmp.eq.s32.totalorder %s218, 0
    %s221 = sadd.s32 %s220, 1
    %s222 = scalar_select %p219, %s220, %s221
    %p225 = pneg %p219
    %p226 = scmp.eq.s32.totalorder %s16, 1
    %p227 = por %p225, %p226
    %p228 = scmp.ne.s32.totalorder %s220, %s223
    %p229 = scmp.eq.s32.totalorder %s16, 0
    %p230 = por %p228, %p229
    %p231 = scmp.ne.s32.totalorder %s220, %s223
    %p232 = scmp.eq.s32.totalorder %s21, 1
    %p233 = por %p231, %p232
    %p234 = scmp.ne.s32.totalorder %s223, %s224
    %p235 = scmp.eq.s32.totalorder %s21, 0
    %p236 = por %p234, %p235
    %p237 = scmp.ne.s32.totalorder %s223, %s224
    %p238 = scmp.eq.s32.totalorder %s22, 1
    %p239 = por %p237, %p238
    %p241 = scmp.ne.s32.totalorder %s224, %s240
    %p242 = scmp.eq.s32.totalorder %s22, 0
    %p243 = por %p241, %p242
    %s244 = ssub.s32 %s23, %s35
    %p245 = scmp.eq.s32.totalorder %s244, 0
    %s247 = sadd.s32 %s246, 1
    %s248 = scalar_select %p245, %s246, %s247
    %p251 = pneg %p245
    %p252 = scmp.eq.s32.totalorder %s16, 1
    %p253 = por %p251, %p252
    %p254 = scmp.ne.s32.totalorder %s246, %s249
    %p255 = scmp.eq.s32.totalorder %s16, 0
    %p256 = por %p254, %p255
    %p257 = scmp.ne.s32.totalorder %s246, %s249
    %p258 = scmp.eq.s32.totalorder %s21, 1
    %p259 = por %p257, %p258
    %p260 = scmp.ne.s32.totalorder %s249, %s250
    %p261 = scmp.eq.s32.totalorder %s21, 0
    %p262 = por %p260, %p261
    %p263 = scmp.ne.s32.totalorder %s249, %s250
    %p264 = scmp.eq.s32.totalorder %s22, 1
    %p265 = por %p263, %p264
    %p267 = scmp.ne.s32.totalorder %s250, %s266
    %p268 = scmp.eq.s32.totalorder %s22, 0
    %p269 = por %p267, %p268
    %s270 = ssub.s32 %s23, %s35
    %p271 = scmp.eq.s32.totalorder %s270, 0
    %s273 = sadd.s32 %s272, 1
    %s274 = scalar_select %p271, %s272, %s273
    %p277 = pneg %p271
    %p278 = scmp.eq.s32.totalorder %s16, 1
    %p279 = por %p277, %p278
    %p280 = scmp.ne.s32.totalorder %s272, %s275
    %p281 = scmp.eq.s32.totalorder %s16, 0
    %p282 = por %p280, %p281
    %p283 = scmp.ne.s32.totalorder %s272, %s275
    %p284 = scmp.eq.s32.totalorder %s21, 1
    %p285 = por %p283, %p284
    %p286 = scmp.ne.s32.totalorder %s275, %s276
    %p287 = scmp.eq.s32.totalorder %s21, 0
    %p288 = por %p286, %p287
    %p289 = scmp.ne.s32.totalorder %s275, %s276
    %p290 = scmp.eq.s32.totalorder %s22, 1
    %p291 = por %p289, %p290
    %p293 = scmp.ne.s32.totalorder %s276, %s292
    %p294 = scmp.eq.s32.totalorder %s22, 0
    %p295 = por %p293, %p294
    %s296 = ssub.s32 %s23, %s35
    %s297 = ssub.s32 %s24, %s31
    %s298 = sor.u32 %s296, %s297
    %p299 = scmp.eq.s32.totalorder %s298, 0
    %s301 = sadd.s32 %s300, 1
    %s302 = scalar_select %p299, %s300, %s301
    %p305 = pneg %p299
    %p306 = scmp.eq.s32.totalorder %s16, 1
    %p307 = por %p305, %p306
    %p308 = scmp.ne.s32.totalorder %s300, %s303
    %p309 = scmp.eq.s32.totalorder %s16, 0
    %p310 = por %p308, %p309
    %p311 = scmp.ne.s32.totalorder %s300, %s303
    %p312 = scmp.eq.s32.totalorder %s21, 1
    %p313 = por %p311, %p312
    %p314 = scmp.ne.s32.totalorder %s303, %s304
    %p315 = scmp.eq.s32.totalorder %s21, 0
    %p316 = por %p314, %p315
    %p317 = scmp.ne.s32.totalorder %s303, %s304
    %p318 = scmp.eq.s32.totalorder %s22, 1
    %p319 = por %p317, %p318
    %p321 = scmp.ne.s32.totalorder %s304, %s320
    %p322 = scmp.eq.s32.totalorder %s22, 0
    %p323 = por %p321, %p322
    %p324 = scmp.le.s32.totalorder 1, %s16
    %p325 = scmp.lt.s32.totalorder %s16, 3
    %p326 = pnand %p324, %p325
    %p327 = pneg %p326
    // Predicated region
    $region9: #{nanogpt_forward.2} parent=5 // pred_check
      _
    $region10: #{nanogpt_forward.2} parent=5 // pred_check_branch
      %329 = sbr.rel (%p326) target = $region12
    $region11: #{nanogpt_forward.2} parent=5 // pred_region
      %s330 = ssub.s32 %s16, 1
    $region12: #{nanogpt_forward.2} parent=5 // pred_fallthru
      _
    %p331 = scmp.lt.s32.totalorder %s16, 2
    // Predicated region
    $region13: #{nanogpt_forward.2} parent=5 // pred_check
      %p332 = pneg %p331
    $region14: #{nanogpt_forward.2} parent=5 // pred_check_branch
      %334 = sbr.rel (%p332) target = $region16
    $region15: #{nanogpt_forward.2} parent=5 // pred_region
      // Predicated region
      $region17: #{nanogpt_forward.2} parent=15 // pred_check
        %p335 = pneg %p48
      $region18: #{nanogpt_forward.2} parent=15 // pred_check_branch
        %337 = sbr.rel (%p335) target = $region20
      $region19: #{nanogpt_forward.2} parent=15 // pred_region
        %p338 = scmp.lt.s32.totalorder %s23, 1
        %s339 = scalar_select %p338, %s23, 1
        %s340 = smul.addr %s339, 2
        %s341 = smul.addr %s340, 8
        %s342 = scalar_lea.vmem %s0, %s341
      $region20: #{nanogpt_forward.2} parent=15 // pred_fallthru
        _
      // Predicated region
      $region21: #{nanogpt_forward.2} parent=15 // pred_check
        %p343 = pneg %p74
      $region22: #{nanogpt_forward.2} parent=15 // pred_check_branch
        %345 = sbr.rel (%p343) target = $region24
      $region23: #{nanogpt_forward.2} parent=15 // pred_region
        %p346 = scmp.lt.s32.totalorder %s23, 1
        %s347 = scalar_select %p346, %s23, 1
        %s348 = scalar_lea.vmem %s1, %s347
      $region24: #{nanogpt_forward.2} parent=15 // pred_fallthru
        _
      // Predicated region
      $region25: #{nanogpt_forward.2} parent=15 // pred_check
        %p349 = pneg %p100
      $region26: #{nanogpt_forward.2} parent=15 // pred_check_branch
        %351 = sbr.rel (%p349) target = $region28
      $region27: #{nanogpt_forward.2} parent=15 // pred_region
        %p352 = scmp.lt.s32.totalorder %s23, 1
        %s353 = scalar_select %p352, %s23, 1
        %s354 = scalar_lea.vmem %s2, %s353
      $region28: #{nanogpt_forward.2} parent=15 // pred_fallthru
        _
      // Predicated region
      $region29: #{nanogpt_forward.2} parent=15 // pred_check
        %p355 = pneg %p126
      $region30: #{nanogpt_forward.2} parent=15 // pred_check_branch
        %357 = sbr.rel (%p355) target = $region32
      $region31: #{nanogpt_forward.2} parent=15 // pred_region
        %p358 = scmp.lt.s32.totalorder %s23, 1
        %s359 = scalar_select %p358, %s23, 1
        %s360 = smul.addr %s359, 2
        %s361 = smul.addr %s360, 4
        %s362 = scalar_lea.vmem %s3, %s361
      $region32: #{nanogpt_forward.2} parent=15 // pred_fallthru
        _
      // Predicated region
      $region33: #{nanogpt_forward.2} parent=15 // pred_check
        %p363 = pneg %p152
      $region34: #{nanogpt_forward.2} parent=15 // pred_check_branch
        %365 = sbr.rel (%p363) target = $region36
      $region35: #{nanogpt_forward.2} parent=15 // pred_region
        %p366 = scmp.lt.s32.totalorder %s23, 1
        %s367 = scalar_select %p366, %s23, 1
        %s368 = smul.addr %s367, 2
        %s369 = smul.addr %s368, 4
        %s370 = scalar_lea.vmem %s4, %s369
      $region36: #{nanogpt_forward.2} parent=15 // pred_fallthru
        _
      // Predicated region
      $region37: #{nanogpt_forward.2} parent=15 // pred_check
        %p371 = pneg %p178
      $region38: #{nanogpt_forward.2} parent=15 // pred_check_branch
        %373 = sbr.rel (%p371) target = $region40
      $region39: #{nanogpt_forward.2} parent=15 // pred_region
        %p374 = scmp.lt.s32.totalorder %s23, 1
        %s375 = scalar_select %p374, %s23, 1
        %s376 = smul.addr %s375, 2
        %s377 = smul.addr %s376, 4
        %s378 = scalar_lea.vmem %s5, %s377
      $region40: #{nanogpt_forward.2} parent=15 // pred_fallthru
        _
      // Predicated region
      $region41: #{nanogpt_forward.2} parent=15 // pred_check
        %p379 = pneg %p204
      $region42: #{nanogpt_forward.2} parent=15 // pred_check_branch
        %381 = sbr.rel (%p379) target = $region44
      $region43: #{nanogpt_forward.2} parent=15 // pred_region
        %p382 = scmp.lt.s32.totalorder %s23, 1
        %s383 = scalar_select %p382, %s23, 1
        %s384 = scalar_lea.vmem %s6, %s383
      $region44: #{nanogpt_forward.2} parent=15 // pred_fallthru
        _
      // Predicated region
      $region45: #{nanogpt_forward.2} parent=15 // pred_check
        %p385 = pneg %p230
      $region46: #{nanogpt_forward.2} parent=15 // pred_check_branch
        %387 = sbr.rel (%p385) target = $region48
      $region47: #{nanogpt_forward.2} parent=15 // pred_region
        %p388 = scmp.lt.s32.totalorder %s23, 1
        %s389 = scalar_select %p388, %s23, 1
        %s390 = scalar_lea.vmem %s7, %s389
      $region48: #{nanogpt_forward.2} parent=15 // pred_fallthru
        _
      // Predicated region
      $region49: #{nanogpt_forward.2} parent=15 // pred_check
        %p391 = pneg %p256
      $region50: #{nanogpt_forward.2} parent=15 // pred_check_branch
        %393 = sbr.rel (%p391) target = $region52
      $region51: #{nanogpt_forward.2} parent=15 // pred_region
        %p394 = scmp.lt.s32.totalorder %s23, 1
        %s395 = scalar_select %p394, %s23, 1
        %s396 = smul.addr %s395, 2
        %s397 = smul.addr %s396, 4
        %s398 = scalar_lea.vmem %s8, %s397
      $region52: #{nanogpt_forward.2} parent=15 // pred_fallthru
        _
      // Predicated region
      $region53: #{nanogpt_forward.2} parent=15 // pred_check
        %p399 = pneg %p282
      $region54: #{nanogpt_forward.2} parent=15 // pred_check_branch
        %401 = sbr.rel (%p399) target = $region56
      $region55: #{nanogpt_forward.2} parent=15 // pred_region
        %p402 = scmp.lt.s32.totalorder %s23, 1
        %s403 = scalar_select %p402, %s23, 1
        %s404 = scalar_lea.vmem %s9, %s403
      $region56: #{nanogpt_forward.2} parent=15 // pred_fallthru
        _
    $region16: #{nanogpt_forward.2} parent=5 // pred_fallthru
      _
    %p405 = scmp.le.s32.totalorder 1, %s16
    %p406 = scmp.lt.s32.totalorder %s16, 3
    %p407 = pnand %p405, %p406
    %p408 = pneg %p407
    // Predicated region
    $region57: #{nanogpt_forward.2} parent=5 // pred_check
      _
    $region58: #{nanogpt_forward.2} parent=5 // pred_check_branch
      %410 = sbr.rel (%p407) target = $region60
    $region59: #{nanogpt_forward.2} parent=5 // pred_region
      %s411 = ssub.s32 %s16, 1
      %p412 = scmp.lt.s32.totalorder %s25, 1
      %s413 = scalar_select %p412, %s25, 1
      %s414 = smul.addr %s413, 2
      %s415 = smul.addr %s414, 8
      %s416 = scalar_lea.vmem %s0, %s415
      %p417 = pneg %p54
      %p418 = pneg %p51
      %p419 = scmp.lt.s32.totalorder %s25, 1
      %s420 = scalar_select %p419, %s25, 1
      %s421 = scalar_lea.vmem %s1, %s420
      %p422 = pneg %p80
      %p423 = pneg %p77
      %p424 = scmp.lt.s32.totalorder %s25, 1
      %s425 = scalar_select %p424, %s25, 1
      %s426 = scalar_lea.vmem %s2, %s425
      %p427 = pneg %p106
      %p428 = pneg %p103
      %p429 = scmp.lt.s32.totalorder %s25, 1
      %s430 = scalar_select %p429, %s25, 1
      %s431 = smul.addr %s430, 2
      %s432 = smul.addr %s431, 4
      %s433 = scalar_lea.vmem %s3, %s432
      %p434 = pneg %p132
      %p435 = pneg %p129
      %p436 = scmp.lt.s32.totalorder %s25, 1
      %s437 = scalar_select %p436, %s25, 1
      %s438 = smul.addr %s437, 2
      %s439 = smul.addr %s438, 4
      %s440 = scalar_lea.vmem %s4, %s439
      %p441 = pneg %p158
      %p442 = pneg %p155
      %p443 = scmp.lt.s32.totalorder %s25, 1
      %s444 = scalar_select %p443, %s25, 1
      %s445 = smul.addr %s444, 2
      %s446 = smul.addr %s445, 4
      %s447 = scalar_lea.vmem %s5, %s446
      %p448 = pneg %p184
      %p449 = pneg %p181
      %p450 = scmp.lt.s32.totalorder %s25, 1
      %s451 = scalar_select %p450, %s25, 1
      %s452 = scalar_lea.vmem %s6, %s451
      %p453 = pneg %p210
      %p454 = pneg %p207
      %p455 = scmp.lt.s32.totalorder %s25, 1
      %s456 = scalar_select %p455, %s25, 1
      %s457 = scalar_lea.vmem %s7, %s456
      %p458 = pneg %p236
      %p459 = pneg %p233
      %p460 = scmp.lt.s32.totalorder %s25, 1
      %s461 = scalar_select %p460, %s25, 1
      %s462 = smul.addr %s461, 2
      %s463 = smul.addr %s462, 4
      %s464 = scalar_lea.vmem %s8, %s463
      %p465 = pneg %p262
      %p466 = pneg %p259
      %p467 = scmp.lt.s32.totalorder %s25, 1
      %s468 = scalar_select %p467, %s25, 1
      %s469 = scalar_lea.vmem %s9, %s468
      %p470 = pneg %p288
      %p471 = pneg %p285
      %p472 = pneg %p316
      %p473 = pneg %p313
      %p474 = scmp.lt.s32.totalorder %s25, 1
      %s475 = scalar_select %p474, %s25, 1
      %p476 = scmp.lt.s32.totalorder %s26, 0
      %s477 = scalar_select %p476, %s26, 0
      %s478 = smul.addr %s475, 2
      %s479 = sadd.s32 %s477, %s478
      %s480 = smul.addr %s479, 8
      %s481 = scalar_lea.vmem %s10, %s480
      %p482 = scmp.lt.s32.totalorder %s25, 1
      %s483 = scalar_select %p482, %s25, 1
      %s484 = smul.addr %s483, 2
      %s485 = smul.addr %s484, 8
      %s486 = scalar_lea.vmem %s0, %s485
      %p487 = scmp.lt.s32.totalorder %s25, 1
      %s488 = scalar_select %p487, %s25, 1
      %s489 = scalar_lea.vmem %s1, %s488
      %p490 = scmp.lt.s32.totalorder %s25, 1
      %s491 = scalar_select %p490, %s25, 1
      %s492 = scalar_lea.vmem %s2, %s491
      %p493 = scmp.lt.s32.totalorder %s25, 1
      %s494 = scalar_select %p493, %s25, 1
      %s495 = smul.addr %s494, 2
      %s496 = smul.addr %s495, 4
      %s497 = scalar_lea.vmem %s3, %s496
      %p498 = scmp.lt.s32.totalorder %s25, 1
      %s499 = scalar_select %p498, %s25, 1
      %s500 = smul.addr %s499, 2
      %s501 = smul.addr %s500, 4
      %s502 = scalar_lea.vmem %s4, %s501
      %p503 = scmp.lt.s32.totalorder %s25, 1
      %s504 = scalar_select %p503, %s25, 1
      %s505 = smul.addr %s504, 2
      %s506 = smul.addr %s505, 4
      %s507 = scalar_lea.vmem %s5, %s506
      %p508 = scmp.lt.s32.totalorder %s25, 1
      %s509 = scalar_select %p508, %s25, 1
      %s510 = scalar_lea.vmem %s6, %s509
      %p511 = scmp.lt.s32.totalorder %s25, 1
      %s512 = scalar_select %p511, %s25, 1
      %s513 = scalar_lea.vmem %s7, %s512
      %p514 = scmp.lt.s32.totalorder %s25, 1
      %s515 = scalar_select %p514, %s25, 1
      %s516 = smul.addr %s515, 2
      %s517 = smul.addr %s516, 4
      %s518 = scalar_lea.vmem %s8, %s517
      %p519 = scmp.lt.s32.totalorder %s25, 1
      %s520 = scalar_select %p519, %s25, 1
      %s521 = scalar_lea.vmem %s9, %s520
      %p522 = scmp.lt.s32.totalorder %s25, 1
      %s523 = scalar_select %p522, %s25, 1
      %p524 = scmp.lt.s32.totalorder %s26, 0
      %s525 = scalar_select %p524, %s26, 0
      %s526 = smul.addr %s523, 2
      %s527 = sadd.s32 %s525, %s526
      %s528 = smul.addr %s527, 8
      %s529 = scalar_lea.vmem %s10, %s528
      %p531 = scmp.eq.s32.totalorder %s26, 0
      // Predicated region
      $region61: #{nanogpt_forward.2} parent=59 // pred_check
        %p532 = pneg %p531
      $region62: #{nanogpt_forward.2} parent=59 // pred_check_branch
        %534 = sbr.rel (%p532) target = $region64
      $region63: #{nanogpt_forward.2} parent=59 // pred_region
        %v535 = vld [vmem:[%s486] sm:$0xff]
        %v536 = vld [vmem:[%s486 + $0x8] sm:$0xff]
        %v537 = vld [vmem:[%s489] sm:$0x1]
        %v538 = vld [vmem:[%s492] sm:$0x1]
        %vm539 = vcmask 130048
        %v540 = vsel %vm539, %v535, 0.0
        %541 = vadd.xlane.f32.xlu0 %v540
        %v542 = vpop.xlane.xlu0 %541
        %v543 = vsel %vm539, %v536, 0.0
        %544 = vadd.xlane.f32.xlu0 %v543
        %v545 = vpop.xlane.xlu0 %544
        %v546 = vrcp.pop 16.0
        %v547 = vmul.f32 %v542, %v546
        %v548 = vmul.f32 %v545, %v546
        %v549 = vsub.f32 %v535, %v547
        %v550 = vsub.f32 %v536, %v548
        %v551 = vmul.f32 %v549, %v549
        %v552 = vmul.f32 %v550, %v550
        %v553 = vsel %vm539, %v551, 0.0
        %554 = vadd.xlane.f32.xlu0 %v553
        %v555 = vpop.xlane.xlu0 %554
        %v556 = vsel %vm539, %v552, 0.0
        %557 = vadd.xlane.f32.xlu0 %v556
        %v558 = vpop.xlane.xlu0 %557
        %v559 = vmul.f32 %v555, %v546
        %v560 = vmul.f32 %v558, %v546
        %v561 = vadd.f32 %v559, 1e-05
        %v562 = vadd.f32 %v560, 1e-05
        %v563 = vrsqrt.pop %v561
        %v564 = vrsqrt.pop %v562
        %v565 = vmul.f32 %v549, %v563
        %v566 = vmul.f32 %v550, %v564
        %v568 = vlaneseq
        %v569 = vshrl.u32 %v568, 7
        %v570 = vsub.s32 0, %v569
        %v571 = vrot.slane %v537, %v570
        %v573 = vmul.f32 %v565, %v571
        %v574 = vmul.f32 %v566, %v571
        %v576 = vlaneseq
        %v577 = vshrl.u32 %v576, 7
        %v578 = vsub.s32 0, %v577
        %v579 = vrot.slane %v538, %v578
        %v581 = vadd.f32 %v573, %v579
        %v582 = vadd.f32 %v574, %v579
        %v583 = vpack.c.bf16 %v581, %v581
        %v584 = vpack.c.bf16 %v582, %v582
        %vm585 = vcmask 125952
        %586 = vst.msk [vmem:[#allocation2] sm:$0xf] %vm585, %v583
        %587 = vst.msk [vmem:[#allocation2 + $0x4] sm:$0xf] %vm585, %v584
        %v588 = vld [vmem:[%s502] sm:$0xf]
        %v589 = vld [vmem:[%s502 + $0x4] sm:$0xf]
        %v592 = vunpack.c.l.b16 %v583
        %v593 = vunpack.c.l.b16 %v584
        %v594 = vpack.c.b16 %v593, %v592
        %v597 = vunpack.c.l.b16 %v588
        %v598 = vunpack.c.l.b16 %v589
        %v599 = vpack.c.b16 %v598, %v597
        %v602 = vsel %vm539, %v594, 0
        %604 = vmatprep.subr.bf16.mxu0 0
        %605 = vmatpush1.bf16.msra.mxu0 %v599
        %606 = vmatprep.subr.bf16.mxu0 0
        %607 = vmatpush1.bf16.msra.mxu0 0
        %608 = vmatprep.subr.bf16.mxu0 0
        %609 = vmatpush1.bf16.msra.mxu0 0
        %610 = vmatprep.subr.bf16.mxu0 0
        %611 = vmatpush1.bf16.msra.mxu0 0
        %612 = vmatprep.subr.bf16.mxu0 0
        %613 = vmatpush1.bf16.msra.mxu0 0
        %614 = vmatprep.subr.bf16.mxu0 0
        %615 = vmatpush1.bf16.msra.mxu0 0
        %616 = vmatprep.subr.bf16.mxu0 0
        %617 = vmatpush1.bf16.msra.mxu0 0
        %618 = vmatprep.subr.bf16.mxu0 0
        %619 = vmatpush1.bf16.msra.mxu0 0
        %620 = vmatprep.subr.bf16.mxu0 0
        %621 = vmatpush1.bf16.msra.mxu0 0
        %622 = vmatprep.subr.bf16.mxu0 0
        %623 = vmatpush1.bf16.msra.mxu0 0
        %624 = vmatprep.subr.bf16.mxu0 0
        %625 = vmatpush1.bf16.msra.mxu0 0
        %626 = vmatprep.subr.bf16.mxu0 0
        %627 = vmatpush1.bf16.msra.mxu0 0
        %628 = vmatprep.subr.bf16.mxu0 0
        %629 = vmatpush1.bf16.msra.mxu0 0
        %630 = vmatprep.subr.bf16.mxu0 0
        %631 = vmatpush1.bf16.msra.mxu0 0
        %632 = vmatprep.subr.bf16.mxu0 0
        %633 = vmatpush1.bf16.msra.mxu0 0
        %634 = vmatprep.subr.bf16.mxu0 0
        %635 = vmatpush1.bf16.msra.mxu0 0
        %636 = vmatprep.mubr.bf16.mxu0 0
        %637 = vmatmul.mubr.bf16.gmra.mrb[0].mxu0 %v602
        %v638 = vpop.f32.mrb[0].mxu0
        %v639 = vadd.f32 0.0, %v638
        %v640 = vpop.f32.mrb[0].mxu0
        %v641 = vpop.f32.mrb[0].mxu0
        %v642 = vadd.f32 0.0, %v641
        %v643 = vpop.f32.mrb[0].mxu0
        %644 = vdwg.mxu0
        %v645 = vpack.c.bf16 %v642, %v639
        %v647 = vunpack.c.l.b16 %v645
        %v648 = vunpack.c.h.b16 %v645
        %v649 = vpack.c.b16 %v647, %v647
        %v650 = vpack.c.b16 %v648, %v648
        %653 = vst.msk [vmem:[#allocation3] sm:$0xf] %vm585, %v649
        %654 = vst.msk [vmem:[#allocation3 + $0x4] sm:$0xf] %vm585, %v650
        %v655 = vld [vmem:[%s507] sm:$0xf]
        %v656 = vld [vmem:[%s507 + $0x4] sm:$0xf]
        %v659 = vunpack.c.l.b16 %v655
        %v660 = vunpack.c.l.b16 %v656
        %v661 = vpack.c.b16 %v660, %v659
        %663 = vmatprep.subr.bf16.mxu0 0
        %664 = vmatpush1.bf16.msra.mxu0 %v661
        %665 = vmatprep.subr.bf16.mxu0 0
        %666 = vmatpush1.bf16.msra.mxu0 0
        %667 = vmatprep.subr.bf16.mxu0 0
        %668 = vmatpush1.bf16.msra.mxu0 0
        %669 = vmatprep.subr.bf16.mxu0 0
        %670 = vmatpush1.bf16.msra.mxu0 0
        %671 = vmatprep.subr.bf16.mxu0 0
        %672 = vmatpush1.bf16.msra.mxu0 0
        %673 = vmatprep.subr.bf16.mxu0 0
        %674 = vmatpush1.bf16.msra.mxu0 0
        %675 = vmatprep.subr.bf16.mxu0 0
        %676 = vmatpush1.bf16.msra.mxu0 0
        %677 = vmatprep.subr.bf16.mxu0 0
        %678 = vmatpush1.bf16.msra.mxu0 0
        %679 = vmatprep.subr.bf16.mxu0 0
        %680 = vmatpush1.bf16.msra.mxu0 0
        %681 = vmatprep.subr.bf16.mxu0 0
        %682 = vmatpush1.bf16.msra.mxu0 0
        %683 = vmatprep.subr.bf16.mxu0 0
        %684 = vmatpush1.bf16.msra.mxu0 0
        %685 = vmatprep.subr.bf16.mxu0 0
        %686 = vmatpush1.bf16.msra.mxu0 0
        %687 = vmatprep.subr.bf16.mxu0 0
        %688 = vmatpush1.bf16.msra.mxu0 0
        %689 = vmatprep.subr.bf16.mxu0 0
        %690 = vmatpush1.bf16.msra.mxu0 0
        %691 = vmatprep.subr.bf16.mxu0 0
        %692 = vmatpush1.bf16.msra.mxu0 0
        %693 = vmatprep.subr.bf16.mxu0 0
        %694 = vmatpush1.bf16.msra.mxu0 0
        %695 = vmatprep.mubr.bf16.mxu0 0
        %696 = vmatmul.mubr.bf16.gmra.mrb[0].mxu0 %v602
        %v697 = vpop.f32.mrb[0].mxu0
        %v698 = vadd.f32 0.0, %v697
        %v699 = vpop.f32.mrb[0].mxu0
        %v700 = vpop.f32.mrb[0].mxu0
        %v701 = vadd.f32 0.0, %v700
        %v702 = vpop.f32.mrb[0].mxu0
        %703 = vdwg.mxu0
        %v704 = vpack.c.bf16 %v701, %v698
        %v706 = vunpack.c.l.b16 %v704
        %v707 = vunpack.c.h.b16 %v704
        %v708 = vpack.c.b16 %v706, %v706
        %v709 = vpack.c.b16 %v707, %v707
        %712 = vst.msk [vmem:[#allocation4] sm:$0xf] %vm585, %v708
        %713 = vst.msk [vmem:[#allocation4 + $0x4] sm:$0xf] %vm585, %v709
      $region64: #{nanogpt_forward.2} parent=59 // pred_fallthru
        _
      %s714 = smul.u32 %s26, 8
      %s715 = scalar_lea.vmem %s486, %s714
      %v716 = vld [vmem:[%s715] sm:$0xff]
      %v717 = vld [vmem:[%s715 + $0x8] sm:$0xff]
      %s718 = sshra.s32 %s714, 3
      %s719 = sand.u32 %s714, 7
      %s720 = smul.addr %s718, 4
      %s721 = scalar_lea.vmem [#allocation2], %s720
      %v722 = vld [vmem:[%s721] sm:$0xf]
      %v723 = vld [vmem:[%s721 + $0x4] sm:$0xf]
      %v724 = vld [vmem:[%s497] sm:$0xf]
      %v725 = vld [vmem:[%s497 + $0x4] sm:$0xf]
      %v728 = vunpack.c.l.b16 %v722
      %v729 = vunpack.c.l.b16 %v723
      %v730 = vpack.c.b16 %v729, %v728
      %v733 = vunpack.c.l.b16 %v724
      %v734 = vunpack.c.l.b16 %v725
      %v735 = vpack.c.b16 %v734, %v733
      %vm737 = vcmask 130048
      %v739 = vsel %vm737, %v730, 0
      %741 = vmatprep.subr.bf16.mxu0 0
      %742 = vmatpush1.bf16.msra.mxu0 %v735
      %743 = vmatprep.subr.bf16.mxu0 0
      %744 = vmatpush1.bf16.msra.mxu0 0
      %745 = vmatprep.subr.bf16.mxu0 0
      %746 = vmatpush1.bf16.msra.mxu0 0
      %747 = vmatprep.subr.bf16.mxu0 0
      %748 = vmatpush1.bf16.msra.mxu0 0
      %749 = vmatprep.subr.bf16.mxu0 0
      %750 = vmatpush1.bf16.msra.mxu0 0
      %751 = vmatprep.subr.bf16.mxu0 0
      %752 = vmatpush1.bf16.msra.mxu0 0
      %753 = vmatprep.subr.bf16.mxu0 0
      %754 = vmatpush1.bf16.msra.mxu0 0
      %755 = vmatprep.subr.bf16.mxu0 0
      %756 = vmatpush1.bf16.msra.mxu0 0
      %757 = vmatprep.subr.bf16.mxu0 0
      %758 = vmatpush1.bf16.msra.mxu0 0
      %759 = vmatprep.subr.bf16.mxu0 0
      %760 = vmatpush1.bf16.msra.mxu0 0
      %761 = vmatprep.subr.bf16.mxu0 0
      %762 = vmatpush1.bf16.msra.mxu0 0
      %763 = vmatprep.subr.bf16.mxu0 0
      %764 = vmatpush1.bf16.msra.mxu0 0
      %765 = vmatprep.subr.bf16.mxu0 0
      %766 = vmatpush1.bf16.msra.mxu0 0
      %767 = vmatprep.subr.bf16.mxu0 0
      %768 = vmatpush1.bf16.msra.mxu0 0
      %769 = vmatprep.subr.bf16.mxu0 0
      %770 = vmatpush1.bf16.msra.mxu0 0
      %771 = vmatprep.subr.bf16.mxu0 0
      %772 = vmatpush1.bf16.msra.mxu0 0
      %773 = vmatprep.mubr.bf16.mxu0 0
      %774 = vmatmul.mubr.bf16.gmra.mrb[0].mxu0 %v739
      %v775 = vpop.f32.mrb[0].mxu0
      %v776 = vadd.f32 0.0, %v775
      %v777 = vpop.f32.mrb[0].mxu0
      %v778 = vpop.f32.mrb[0].mxu0
      %v779 = vadd.f32 0.0, %v778
      %v780 = vpop.f32.mrb[0].mxu0
      %781 = vdwg.mxu0
      %v782 = vmul.f32 %v776, 0.25
      %v783 = vmul.f32 %v779, 0.25
      %v784 = vpack.c.bf16 %v783, %v782
      %v786 = vunpack.c.l.b16 %v784
      %v787 = vunpack.c.h.b16 %v784
      %v788 = vpack.c.b16 %v786, %v786
      %v789 = vpack.c.b16 %v787, %v787
      %v790 = vld [vmem:[#allocation3] sm:$0xf]
      %v791 = vld [vmem:[#allocation3 + $0x4] sm:$0xf]
      %v793 = vsel %vm737, %v788, 0
      %v796 = vsel %vm737, %v790, 0
      %798 = vmatprep.subr.bf16.mxu0 0
      %799 = vmatpush1.bf16.xpose.msra.mxu0 %v796
      %800 = vmatprep.subr.bf16.mxu0 0
      %801 = vmatpush1.bf16.xpose.msra.mxu0 0
      %802 = vmatprep.subr.bf16.mxu0 0
      %803 = vmatpush1.bf16.xpose.msra.mxu0 0
      %804 = vmatprep.subr.bf16.mxu0 0
      %805 = vmatpush1.bf16.xpose.msra.mxu0 0
      %806 = vmatprep.subr.bf16.mxu0 0
      %807 = vmatpush1.bf16.xpose.msra.mxu0 0
      %808 = vmatprep.subr.bf16.mxu0 0
      %809 = vmatpush1.bf16.xpose.msra.mxu0 0
      %810 = vmatprep.subr.bf16.mxu0 0
      %811 = vmatpush1.bf16.xpose.msra.mxu0 0
      %812 = vmatprep.subr.bf16.mxu0 0
      %813 = vmatpush1.bf16.xpose.msra.mxu0 0
      %814 = vmatprep.subr.bf16.mxu0 0
      %815 = vmatpush1.bf16.xpose.msra.mxu0 0
      %816 = vmatprep.subr.bf16.mxu0 0
      %817 = vmatpush1.bf16.xpose.msra.mxu0 0
      %818 = vmatprep.subr.bf16.mxu0 0
      %819 = vmatpush1.bf16.xpose.msra.mxu0 0
      %820 = vmatprep.subr.bf16.mxu0 0
      %821 = vmatpush1.bf16.xpose.msra.mxu0 0
      %822 = vmatprep.subr.bf16.mxu0 0
      %823 = vmatpush1.bf16.xpose.msra.mxu0 0
      %824 = vmatprep.subr.bf16.mxu0 0
      %825 = vmatpush1.bf16.xpose.msra.mxu0 0
      %826 = vmatprep.subr.bf16.mxu0 0
      %827 = vmatpush1.bf16.xpose.msra.mxu0 0
      %828 = vmatprep.subr.bf16.mxu0 0
      %829 = vmatpush1.bf16.xpose.msra.mxu0 0
      %830 = vmatprep.mubr.bf16.mxu0 0
      %831 = vmatmul.mubr.bf16.gmra.mrb[0].mxu0 %v793
      %v832 = vpop.f32.mrb[0].mxu0
      %v833 = vadd.f32 0.0, %v832
      %v834 = vpop.f32.mrb[0].mxu0
      %v835 = vpop.f32.mrb[0].mxu0
      %v836 = vpop.f32.mrb[0].mxu0
      %837 = vdwg.mxu0
      %v839 = vsel %vm737, %v789, 0
      %v842 = vsel %vm737, %v791, 0
      %844 = vmatprep.subr.bf16.mxu0 0
      %845 = vmatpush1.bf16.xpose.msra.mxu0 %v842
      %846 = vmatprep.subr.bf16.mxu0 0
      %847 = vmatpush1.bf16.xpose.msra.mxu0 0
      %848 = vmatprep.subr.bf16.mxu0 0
      %849 = vmatpush1.bf16.xpose.msra.mxu0 0
      %850 = vmatprep.subr.bf16.mxu0 0
      %851 = vmatpush1.bf16.xpose.msra.mxu0 0
      %852 = vmatprep.subr.bf16.mxu0 0
      %853 = vmatpush1.bf16.xpose.msra.mxu0 0
      %854 = vmatprep.subr.bf16.mxu0 0
      %855 = vmatpush1.bf16.xpose.msra.mxu0 0
      %856 = vmatprep.subr.bf16.mxu0 0
      %857 = vmatpush1.bf16.xpose.msra.mxu0 0
      %858 = vmatprep.subr.bf16.mxu0 0
      %859 = vmatpush1.bf16.xpose.msra.mxu0 0
      %860 = vmatprep.subr.bf16.mxu0 0
      %861 = vmatpush1.bf16.xpose.msra.mxu0 0
      %862 = vmatprep.subr.bf16.mxu0 0
      %863 = vmatpush1.bf16.xpose.msra.mxu0 0
      %864 = vmatprep.subr.bf16.mxu0 0
      %865 = vmatpush1.bf16.xpose.msra.mxu0 0
      %866 = vmatprep.subr.bf16.mxu0 0
      %867 = vmatpush1.bf16.xpose.msra.mxu0 0
      %868 = vmatprep.subr.bf16.mxu0 0
      %869 = vmatpush1.bf16.xpose.msra.mxu0 0
      %870 = vmatprep.subr.bf16.mxu0 0
      %871 = vmatpush1.bf16.xpose.msra.mxu0 0
      %872 = vmatprep.subr.bf16.mxu0 0
      %873 = vmatpush1.bf16.xpose.msra.mxu0 0
      %874 = vmatprep.subr.bf16.mxu0 0
      %875 = vmatpush1.bf16.xpose.msra.mxu0 0
      %876 = vmatprep.mubr.bf16.mxu0 0
      %877 = vmatmul.mubr.bf16.gmra.mrb[0].mxu0 %v839
      %v878 = vpop.f32.mrb[0].mxu0
      %v879 = vadd.f32 0.0, %v878
      %v880 = vpop.f32.mrb[0].mxu0
      %v881 = vpop.f32.mrb[0].mxu0
      %v882 = vpop.f32.mrb[0].mxu0
      %883 = vdwg.mxu0
      %v884 = vlaneseq
      %v885 = vshrl.u32 %v884, 7
      %v886 = vstv %s714
      %v887 = vadd.s32 %v886, %v885
      %v888 = vlaneseq
      %v889 = vand.u32 %v888, 127
      %vm890 = vcmp.le.s32.totalorder %v889, %v887
      %v891 = vsel %vm890, 1, 0
      %vm892 = vcmp.eq.s32.totalorder %v891, 1
      %v893 = vsel %vm892, %v833, -1e+30
      %v894 = vsel %vm892, %v879, -1e+30
      %vm895 = vcmask 64512
      %v896 = vsel %vm895, %v893, -inf
      %897 = vmax.xlane.f32.xlu0 %v896
      %v898 = vpop.xlane.xlu0 %897
      %v899 = vsel %vm895, %v894, -inf
      %900 = vmax.xlane.f32.xlu0 %v899
      %v901 = vpop.xlane.xlu0 %900
      %v902 = vsub.f32 %v893, %v898
      %v903 = vsub.f32 %v894, %v901
      %v904 = vmul.f32 %v902, 1.442695
      %v905 = vpow.pop %v904
      %v906 = vmul.f32 %v903, 1.442695
      %v907 = vpow.pop %v906
      %v908 = vsel %vm895, %v905, 0.0
      %909 = vadd.xlane.f32.xlu0 %v908
      %v910 = vpop.xlane.xlu0 %909
      %v911 = vsel %vm895, %v907, 0.0
      %912 = vadd.xlane.f32.xlu0 %v911
      %v913 = vpop.xlane.xlu0 %912
      %v914 = vrcp.pop %v910
      %v915 = vrcp.pop %v913
      %v916 = vmul.f32 %v905, %v914
      %v917 = vmul.f32 %v907, %v915
      %v918 = vpack.c.bf16 %v916, %v916
      %v919 = vpack.c.bf16 %v917, %v917
      %v920 = vld [vmem:[#allocation4] sm:$0xf]
      %v921 = vld [vmem:[#allocation4 + $0x4] sm:$0xf]
      %v923 = vsel %vm895, %v918, 0
      %vm925 = vcmask 1043456
      %v927 = vsel %vm925, %v920, 0
      %929 = vmatprep.subr.bf16.mxu0 0
      %930 = vmatpush1.bf16.msra.mxu0 %v927
      %931 = vmatprep.subr.bf16.mxu0 0
      %932 = vmatpush1.bf16.msra.mxu0 0
      %933 = vmatprep.subr.bf16.mxu0 0
      %934 = vmatpush1.bf16.msra.mxu0 0
      %935 = vmatprep.subr.bf16.mxu0 0
      %936 = vmatpush1.bf16.msra.mxu0 0
      %937 = vmatprep.subr.bf16.mxu0 0
      %938 = vmatpush1.bf16.msra.mxu0 0
      %939 = vmatprep.subr.bf16.mxu0 0
      %940 = vmatpush1.bf16.msra.mxu0 0
      %941 = vmatprep.subr.bf16.mxu0 0
      %942 = vmatpush1.bf16.msra.mxu0 0
      %943 = vmatprep.subr.bf16.mxu0 0
      %944 = vmatpush1.bf16.msra.mxu0 0
      %945 = vmatprep.subr.bf16.mxu0 0
      %946 = vmatpush1.bf16.msra.mxu0 0
      %947 = vmatprep.subr.bf16.mxu0 0
      %948 = vmatpush1.bf16.msra.mxu0 0
      %949 = vmatprep.subr.bf16.mxu0 0
      %950 = vmatpush1.bf16.msra.mxu0 0
      %951 = vmatprep.subr.bf16.mxu0 0
      %952 = vmatpush1.bf16.msra.mxu0 0
      %953 = vmatprep.subr.bf16.mxu0 0
      %954 = vmatpush1.bf16.msra.mxu0 0
      %955 = vmatprep.subr.bf16.mxu0 0
      %956 = vmatpush1.bf16.msra.mxu0 0
      %957 = vmatprep.subr.bf16.mxu0 0
      %958 = vmatpush1.bf16.msra.mxu0 0
      %959 = vmatprep.subr.bf16.mxu0 0
      %960 = vmatpush1.bf16.msra.mxu0 0
      %961 = vmatprep.mubr.bf16.mxu0 0
      %962 = vmatmul.mubr.bf16.gmra.mrb[0].mxu0 %v923
      %v963 = vpop.f32.mrb[0].mxu0
      %v964 = vadd.f32 0.0, %v963
      %v965 = vpop.f32.mrb[0].mxu0
      %v966 = vpop.f32.mrb[0].mxu0
      %v967 = vpop.f32.mrb[0].mxu0
      %968 = vdwg.mxu0
      %v970 = vsel %vm895, %v919, 0
      %v973 = vsel %vm925, %v921, 0
      %975 = vmatprep.subr.bf16.mxu0 0
      %976 = vmatpush1.bf16.msra.mxu0 %v973
      %977 = vmatprep.subr.bf16.mxu0 0
      %978 = vmatpush1.bf16.msra.mxu0 0
      %979 = vmatprep.subr.bf16.mxu0 0
      %980 = vmatpush1.bf16.msra.mxu0 0
      %981 = vmatprep.subr.bf16.mxu0 0
      %982 = vmatpush1.bf16.msra.mxu0 0
      %983 = vmatprep.subr.bf16.mxu0 0
      %984 = vmatpush1.bf16.msra.mxu0 0
      %985 = vmatprep.subr.bf16.mxu0 0
      %986 = vmatpush1.bf16.msra.mxu0 0
      %987 = vmatprep.subr.bf16.mxu0 0
      %988 = vmatpush1.bf16.msra.mxu0 0
      %989 = vmatprep.subr.bf16.mxu0 0
      %990 = vmatpush1.bf16.msra.mxu0 0
      %991 = vmatprep.subr.bf16.mxu0 0
      %992 = vmatpush1.bf16.msra.mxu0 0
      %993 = vmatprep.subr.bf16.mxu0 0
      %994 = vmatpush1.bf16.msra.mxu0 0
      %995 = vmatprep.subr.bf16.mxu0 0
      %996 = vmatpush1.bf16.msra.mxu0 0
      %997 = vmatprep.subr.bf16.mxu0 0
      %998 = vmatpush1.bf16.msra.mxu0 0
      %999 = vmatprep.subr.bf16.mxu0 0
      %1000 = vmatpush1.bf16.msra.mxu0 0
      %1001 = vmatprep.subr.bf16.mxu0 0
      %1002 = vmatpush1.bf16.msra.mxu0 0
      %1003 = vmatprep.subr.bf16.mxu0 0
      %1004 = vmatpush1.bf16.msra.mxu0 0
      %1005 = vmatprep.subr.bf16.mxu0 0
      %1006 = vmatpush1.bf16.msra.mxu0 0
      %1007 = vmatprep.mubr.bf16.mxu0 0
      %1008 = vmatmul.mubr.bf16.gmra.mrb[0].mxu0 %v970
      %v1009 = vpop.f32.mrb[0].mxu0
      %v1010 = vadd.f32 0.0, %v1009
      %v1011 = vpop.f32.mrb[0].mxu0
      %v1012 = vpop.f32.mrb[0].mxu0
      %v1013 = vpop.f32.mrb[0].mxu0
      %1014 = vdwg.mxu0
      %v1015 = vadd.f32 %v716, %v964
      %v1016 = vadd.f32 %v717, %v1010
      %v1017 = vld [vmem:[%s510] sm:$0x1]
      %v1018 = vld [vmem:[%s513] sm:$0x1]
      %v1019 = vsel %vm737, %v1015, 0.0
      %1020 = vadd.xlane.f32.xlu0 %v1019
      %v1021 = vpop.xlane.xlu0 %1020
      %v1022 = vsel %vm737, %v1016, 0.0
      %1023 = vadd.xlane.f32.xlu0 %v1022
      %v1024 = vpop.xlane.xlu0 %1023
      %v1025 = vrcp.pop 16.0
      %v1026 = vmul.f32 %v1021, %v1025
      %v1027 = vmul.f32 %v1024, %v1025
      %v1028 = vsub.f32 %v1015, %v1026
      %v1029 = vsub.f32 %v1016, %v1027
      %v1030 = vmul.f32 %v1028, %v1028
      %v1031 = vmul.f32 %v1029, %v1029
      %v1032 = vsel %vm737, %v1030, 0.0
      %1033 = vadd.xlane.f32.xlu0 %v1032
      %v1034 = vpop.xlane.xlu0 %1033
      %v1035 = vsel %vm737, %v1031, 0.0
      %1036 = vadd.xlane.f32.xlu0 %v1035
      %v1037 = vpop.xlane.xlu0 %1036
      %v1038 = vmul.f32 %v1034, %v1025
      %v1039 = vmul.f32 %v1037, %v1025
      %v1040 = vadd.f32 %v1038, 1e-05
      %v1041 = vadd.f32 %v1039, 1e-05
      %v1042 = vrsqrt.pop %v1040
      %v1043 = vrsqrt.pop %v1041
      %v1044 = vmul.f32 %v1028, %v1042
      %v1045 = vmul.f32 %v1029, %v1043
      %v1047 = vlaneseq
      %v1048 = vshrl.u32 %v1047, 7
      %v1049 = vsub.s32 0, %v1048
      %v1050 = vrot.slane %v1017, %v1049
      %v1052 = vmul.f32 %v1044, %v1050
      %v1053 = vmul.f32 %v1045, %v1050
      %v1055 = vlaneseq
      %v1056 = vshrl.u32 %v1055, 7
      %v1057 = vsub.s32 0, %v1056
      %v1058 = vrot.slane %v1018, %v1057
      %v1060 = vadd.f32 %v1052, %v1058
      %v1061 = vadd.f32 %v1053, %v1058
      %v1062 = vpack.c.bf16 %v1060, %v1060
      %v1063 = vpack.c.bf16 %v1061, %v1061
      %v1064 = vld [vmem:[%s518] sm:$0xf]
      %v1065 = vld [vmem:[%s518 + $0x4] sm:$0xf]
      %v1068 = vunpack.c.l.b16 %v1062
      %v1069 = vunpack.c.l.b16 %v1063
      %v1070 = vpack.c.b16 %v1069, %v1068
      %v1073 = vunpack.c.l.b16 %v1064
      %v1074 = vunpack.c.l.b16 %v1065
      %v1075 = vpack.c.b16 %v1074, %v1073
      %v1078 = vsel %vm737, %v1070, 0
      %1080 = vmatprep.subr.bf16.mxu0 0
      %1081 = vmatpush1.bf16.msra.mxu0 %v1075
      %1082 = vmatprep.subr.bf16.mxu0 0
      %1083 = vmatpush1.bf16.msra.mxu0 0
      %1084 = vmatprep.subr.bf16.mxu0 0
      %1085 = vmatpush1.bf16.msra.mxu0 0
      %1086 = vmatprep.subr.bf16.mxu0 0
      %1087 = vmatpush1.bf16.msra.mxu0 0
      %1088 = vmatprep.subr.bf16.mxu0 0
      %1089 = vmatpush1.bf16.msra.mxu0 0
      %1090 = vmatprep.subr.bf16.mxu0 0
      %1091 = vmatpush1.bf16.msra.mxu0 0
      %1092 = vmatprep.subr.bf16.mxu0 0
      %1093 = vmatpush1.bf16.msra.mxu0 0
      %1094 = vmatprep.subr.bf16.mxu0 0
      %1095 = vmatpush1.bf16.msra.mxu0 0
      %1096 = vmatprep.subr.bf16.mxu0 0
      %1097 = vmatpush1.bf16.msra.mxu0 0
      %1098 = vmatprep.subr.bf16.mxu0 0
      %1099 = vmatpush1.bf16.msra.mxu0 0
      %1100 = vmatprep.subr.bf16.mxu0 0
      %1101 = vmatpush1.bf16.msra.mxu0 0
      %1102 = vmatprep.subr.bf16.mxu0 0
      %1103 = vmatpush1.bf16.msra.mxu0 0
      %1104 = vmatprep.subr.bf16.mxu0 0
      %1105 = vmatpush1.bf16.msra.mxu0 0
      %1106 = vmatprep.subr.bf16.mxu0 0
      %1107 = vmatpush1.bf16.msra.mxu0 0
      %1108 = vmatprep.subr.bf16.mxu0 0
      %1109 = vmatpush1.bf16.msra.mxu0 0
      %1110 = vmatprep.subr.bf16.mxu0 0
      %1111 = vmatpush1.bf16.msra.mxu0 0
      %1112 = vmatprep.mubr.bf16.mxu0 0
      %1113 = vmatmul.mubr.bf16.gmra.mrb[0].mxu0 %v1078
      %v1114 = vpop.f32.mrb[0].mxu0
      %v1115 = vadd.f32 0.0, %v1114
      %v1116 = vpop.f32.mrb[0].mxu0
      %v1117 = vpop.f32.mrb[0].mxu0
      %v1118 = vadd.f32 0.0, %v1117
      %v1119 = vpop.f32.mrb[0].mxu0
      %1120 = vdwg.mxu0
      %v1121 = vadd.f32 %v1015, %v1115
      %v1122 = vadd.f32 %v1016, %v1118
      %v1123 = vld [vmem:[%s521] sm:$0x1]
      %v1125 = vlaneseq
      %v1126 = vshrl.u32 %v1125, 7
      %v1127 = vsub.s32 0, %v1126
      %v1128 = vrot.slane %v1123, %v1127
      %v1130 = vadd.f32 %v1121, %v1128
      %v1131 = vadd.f32 %v1122, %v1128
      %1132 = vst.msk [vmem:[%s529] sm:$0xff] %vm737, %v1130
      %1133 = vst.msk [vmem:[%s529 + $0x8] sm:$0xff] %vm737, %v1131
      %p1134 = scmp.lt.s32.totalorder %s25, 1
      %s1135 = scalar_select %p1134, %s25, 1
      %p1136 = scmp.lt.s32.totalorder %s26, 0
      %s1137 = scalar_select %p1136, %s26, 0
      %s1138 = smul.addr %s1135, 2
      %s1139 = sadd.s32 %s1137, %s1138
      %s1140 = smul.addr %s1139, 8
      %s1141 = scalar_lea.vmem %s10, %s1140
      // Predicated region
      $region65: #{nanogpt_forward.2} parent=59 // pred_check
        %p1142 = pneg %p313
      $region66: #{nanogpt_forward.2} parent=59 // pred_check_branch
        %1144 = sbr.rel (%p1142) target = $region68
      $region67: #{nanogpt_forward.2} parent=59 // pred_region
        _
      $region68: #{nanogpt_forward.2} parent=59 // pred_fallthru
        _
    $region60: #{nanogpt_forward.2} parent=5 // pred_fallthru
      _
    %p1145 = scmp.le.s32.totalorder 2, %s16
    // Predicated region
    $region69: #{nanogpt_forward.2} parent=5 // pred_check
      %p1146 = pneg %p1145
    $region70: #{nanogpt_forward.2} parent=5 // pred_check_branch
      %1148 = sbr.rel (%p1146) target = $region72
    $region71: #{nanogpt_forward.2} parent=5 // pred_region
      %s1149 = ssub.s32 %s16, 2
      // Predicated region
      $region73: #{nanogpt_forward.2} parent=71 // pred_check
        %p1150 = pneg %p319
      $region74: #{nanogpt_forward.2} parent=71 // pred_check_branch
        %1152 = sbr.rel (%p1150) target = $region76
      $region75: #{nanogpt_forward.2} parent=71 // pred_region
        %p1153 = scmp.lt.s32.totalorder %s27, 1
        %s1154 = scalar_select %p1153, %s27, 1
        %p1155 = scmp.lt.s32.totalorder %s28, 0
        %s1156 = scalar_select %p1155, %s28, 0
        %s1157 = smul.addr %s1154, 2
        %s1158 = sadd.s32 %s1156, %s1157
        %s1159 = smul.addr %s1158, 8
        %s1160 = scalar_lea.vmem %s10, %s1159
      $region76: #{nanogpt_forward.2} parent=71 // pred_fallthru
        _
    $region72: #{nanogpt_forward.2} parent=5 // pred_fallthru
      _
  $region6: #{nanogpt_forward.2} parent=0 // loop_footer
    %s20 = sadd.s32 1, %s16
  $region7: #{nanogpt_forward.2} parent=0 // loop_footer_branch
    %15 = sbr.rel target = $region3
  $region8: #{nanogpt_forward.2} parent=0 // loop_exit
    _

</llo_original>
